<compile_context>
chip_gen: v5e
topology: v5e:2x2
jax: 0.10.0
libtpu: 0.0.40
codegen_flags: <defaults>
</compile_context>

<pallas_src>
import math

import jax
import jax.numpy as jnp
from jax.experimental import pallas as pl
from jax.experimental.pallas import tpu as pltpu

# ----------------------------- model dimensions -----------------------------
B, S = 2, 8            # batch, sequence length
H, NH = 32, 2          # hidden size, attention heads
DH = H // NH           # head dim
I = 64                 # FFN intermediate size
VOCAB = 100            # tokenizer.vocab_size (synthetic)
N_LABEL = 4            # n_label
N_LAYERS = 2           # encoder layers
MAX_POS = 16
TYPE_VOCAB = 2

# lane offsets inside the per-layer H-row weight slab (128-aligned -> no rotations)
_QKV_OFF = 0
_WI_OFF = 128
_WO_OFF = 256
_WSLAB_LANES = 384

_BIAS_LANES = 3 * H            # widest bias vector (bqkv)
_ROWS_PER_LAYER = 8            # bqkv, bo, ln1_g, ln1_b, bi, bo2, ln2_g, ln2_b
_GLOBAL_BASE = _ROWS_PER_LAYER * N_LAYERS   # emb_ln_g, emb_ln_b, pool_b, fc1_b, fc2_b

VMEM_SPEC = pl.BlockSpec(memory_space=pltpu.MemorySpace.VMEM)


# ------------------------------ in-kernel helpers ----------------------------
def _ln(x, g, b):
    mu = jnp.mean(x, axis=-1, keepdims=True)
    xc = x - mu
    var = jnp.mean(xc * xc, axis=-1, keepdims=True)
    return xc * jax.lax.rsqrt(var + 1e-12) * g + b


def _gelu(x):
    # TODO(synk): HF BERT uses exact erf-GELU; tanh approximation used here for
    # robust Mosaic transcendental lowering (deviation ~1e-3).
    c = math.sqrt(2.0 / math.pi)
    return 0.5 * x * (1.0 + jnp.tanh(c * (x + 0.044715 * x * x * x)))


# ------------------------------ fused forward kernel -------------------------
def _fused_kernel(emb_ref, mb_ref, wh_ref, wf_ref, bias_ref, hw_ref, o_ref):
    # Load the (tiny) bias slab once; all vectors are value-sliced from it.
    bias = bias_ref[...]                                # [21, 96]

    def brow(r, w):                                     # static row / width
        return bias[r:r + 1, 0:w]                       # [1, w]

    x = _ln(emb_ref[...], brow(_GLOBAL_BASE, H), brow(_GLOBAL_BASE + 1, H))  # [B*S, H]
    mb = mb_ref[...]                                    # [B, S, S] additive mask bias
    scale = 1.0 / math.sqrt(DH)

    # Encoder layers (static unroll: N_LAYERS is a compile-time constant).
    for l in range(N_LAYERS):
        base = _ROWS_PER_LAYER * l
        wh = wh_ref[l]                                  # [H, 384] packed weight slab
        wqkv = wh[:, _QKV_OFF:_QKV_OFF + 3 * H]         # [H, 3H]
        wi = wh[:, _WI_OFF:_WI_OFF + I]                 # [H, I]
        wo = wh[:, _WO_OFF:_WO_OFF + H]                 # [H, H]
        wo2 = wf_ref[l]                                 # [I, H]

        # --- self-attention: fused QKV -> batched per-head SDPA -> output proj ---
        qkv = jnp.dot(x, wqkv, preferred_element_type=jnp.float32) + brow(base, 3 * H)
        qkv3 = qkv.reshape(B, S, 3 * H)                 # sublane-tile-aligned reshape

        attn = jnp.zeros((B * S, H), jnp.float32)
        for h in range(NH):                             # NH=2, static unroll
            qh = qkv3[:, :, h * DH:(h + 1) * DH]                      # [B, S, DH]
            kh = qkv3[:, :, H + h * DH:H + (h + 1) * DH]              # [B, S, DH]
            vh = qkv3[:, :, 2 * H + h * DH:2 * H + (h + 1) * DH]      # [B, S, DH]
            s = jnp.einsum('bqd,bkd->bqk', qh, kh,
                           preferred_element_type=jnp.float32) * scale + mb
            s = s - jnp.max(s, axis=-1, keepdims=True)                # stable softmax
            p = jnp.exp(s)
            p = p * pl.reciprocal(jnp.sum(p, axis=-1, keepdims=True), approx=True)
            ctx = jnp.einsum('bqk,bkd->bqd', p, vh,
                             preferred_element_type=jnp.float32)      # [B, S, DH]
            # Fold the head-merge into the output projection: accumulate the
            # per-head contribution ctx @ wo[h*DH:(h+1)*DH, :].
            attn = attn + jnp.dot(ctx.reshape(B * S, DH),
                                  wo[h * DH:(h + 1) * DH, :],
                                  preferred_element_type=jnp.float32)
        attn = attn + brow(base + 1, H)

        # residual + LayerNorm epilogue
        x = _ln(x + attn, brow(base + 2, H), brow(base + 3, H))

        # --- feed-forward with fused GELU and residual+LayerNorm epilogue ---
        inter = _gelu(jnp.dot(x, wi, preferred_element_type=jnp.float32)
                      + brow(base + 4, I))
        ffn = jnp.dot(inter, wo2, preferred_element_type=jnp.float32) + brow(base + 5, H)
        x = _ln(x + ffn, brow(base + 6, H), brow(base + 7, H))

    # --- pooler + classification head on ALL rows (MXU latency-bound, rows free),
    #     CLS rows selected once from the final logits (no per-batch row gather). ---
    hw = hw_ref[...]                                    # [3H, H]
    pw = hw[0:H, :]
    f1w = hw[H:2 * H, :]
    f2w = hw[2 * H:3 * H, 0:N_LABEL]

    pooled = jnp.tanh(jnp.dot(x, pw, preferred_element_type=jnp.float32)
                      + brow(_GLOBAL_BASE + 2, H))
    hh = jnp.maximum(pooled, 0.0)
    hh = jnp.maximum(jnp.dot(hh, f1w, preferred_element_type=jnp.float32)
                     + brow(_GLOBAL_BASE + 3, H), 0.0)
    logits = (jnp.dot(hh, f2w, preferred_element_type=jnp.float32)
              + brow(_GLOBAL_BASE + 4, N_LABEL))        # [B*S, N_LABEL]
    o_ref[...] = logits.reshape(B, S, N_LABEL)[:, 0, :].astype(o_ref.dtype)


def fused_forward(emb2d, maskbias, wslab_h, wslab_f, bias_slab, head_w):
    ins = [emb2d, maskbias, wslab_h, wslab_f, bias_slab, head_w]
    return pl.pallas_call(
        _fused_kernel,
        out_shape=jax.ShapeDtypeStruct((B, N_LABEL), jnp.float32),
        in_specs=[VMEM_SPEC] * len(ins),
        out_specs=VMEM_SPEC,
    )(*ins)


# ----------------------------- parameter init --------------------------------
def init_params(key):
    keys = iter(jax.random.split(key, 64))

    def w(shape):
        return (0.02 * jax.random.normal(next(keys), shape)).astype(jnp.float32)

    def zeros(shape):
        return jnp.zeros(shape, jnp.float32)

    def ones(shape):
        return jnp.ones(shape, jnp.float32)

    L = N_LAYERS
    return {
        "word_emb": w((VOCAB, H)),
        "pos_emb": w((MAX_POS, H)),
        "type_emb": w((TYPE_VOCAB, H)),
        "emb_ln_g": ones((1, H)), "emb_ln_b": zeros((1, H)),
        "wqkv": w((L, H, 3 * H)), "bqkv": w((L, 1, 3 * H)),
        "wo": w((L, H, H)), "bo": w((L, 1, H)),
        "ln1_g": ones((L, 1, H)), "ln1_b": zeros((L, 1, H)),
        "wi": w((L, H, I)), "bi": w((L, 1, I)),
        "wo2": w((L, I, H)), "bo2": w((L, 1, H)),
        "ln2_g": ones((L, 1, H)), "ln2_b": zeros((L, 1, H)),
        "pool_w": w((H, H)), "pool_b": w((1, H)),
        "fc1_w": w((H, H)), "fc1_b": w((1, H)),
        "fc2_w": w((H, N_LABEL)), "fc2_b": w((1, N_LABEL)),
    }


# ----------------------------- parameter packing ------------------------------
def pack_params(p):
    """Pack all encoder/head parameters into 4 slabs (done once, outside the jit)."""
    L = N_LAYERS

    def pad_lanes(a, width):
        return jnp.pad(a, ((0, 0),) * (a.ndim - 1) + ((0, width - a.shape[-1]),))

    # Per-layer H-row weights, each at a 128-aligned lane offset: [L, H, 384].
    wslab_h = jnp.concatenate([pad_lanes(p["wqkv"], 128),
                               pad_lanes(p["wi"], 128),
                               pad_lanes(p["wo"], 128)], axis=-1)
    # Per-layer FFN output weights: [L, I, H].
    wslab_f = p["wo2"]

    # Bias / LayerNorm slab: one vector per row, lane offset 0, width 3H: [21, 96].
    rows = []
    for l in range(L):
        rows += [p["bqkv"][l], p["bo"][l], p["ln1_g"][l], p["ln1_b"][l],
                 p["bi"][l], p["bo2"][l], p["ln2_g"][l], p["ln2_b"][l]]
    rows += [p["emb_ln_g"], p["emb_ln_b"], p["pool_b"], p["fc1_b"], p["fc2_b"]]
    bias_slab = jnp.concatenate([pad_lanes(r, _BIAS_LANES) for r in rows], axis=0)

    # Head weights stacked along sublanes: [3H, H] (fc2 lanes zero-padded to H).
    head_w = jnp.concatenate([p["pool_w"], p["fc1_w"],
                              pad_lanes(p["fc2_w"], H)], axis=0)

    return {
        "word_emb": p["word_emb"], "pos_emb": p["pos_emb"], "type_emb": p["type_emb"],
        "wslab_h": wslab_h, "wslab_f": wslab_f,
        "bias_slab": bias_slab, "head_w": head_w,
    }


# -------------------------------- forward ------------------------------------
def wrime_bert_forward(packed, ids, mask, token_type_ids):
    Bv, Sv = ids.shape

    # BERT embedding gathers stay in XLA (vocab table never enters VMEM).
    emb = (jnp.take(packed["word_emb"], ids, axis=0)
           + packed["pos_emb"][:Sv][None, :, :]
           + jnp.take(packed["type_emb"], token_type_ids, axis=0))
    emb2d = emb.reshape(Bv * Sv, H).astype(jnp.float32)

    # Additive attention-mask bias, precomputed & pre-broadcast once: [B, S, S].
    mb = (1.0 - mask.astype(jnp.float32)) * (-1e9)
    maskbias = jnp.broadcast_to(mb[:, None, :], (Bv, Sv, Sv))

    return fused_forward(emb2d, maskbias, packed["wslab_h"], packed["wslab_f"],
                         packed["bias_slab"], packed["head_w"])


# ---------------------------------- main --------------------------------------
if __name__ == "__main__":
    key = jax.random.PRNGKey(0)
    pkey, ikey = jax.random.split(key)
    params = init_params(pkey)
    packed = pack_params(params)          # one-time packing, outside the jit

    ids = jax.random.randint(ikey, (B, S), 0, VOCAB, dtype=jnp.int32)
    mask = jnp.array([[1] * S, [1] * (S - 2) + [0] * 2], dtype=jnp.int32)
    token_type_ids = jnp.concatenate(
        [jnp.zeros((B, S // 2), jnp.int32), jnp.ones((B, S // 2), jnp.int32)], axis=1)

    logits = jax.jit(wrime_bert_forward)(packed, ids, mask, token_type_ids)
    jax.block_until_ready(logits)
    assert logits.shape == (B, N_LABEL) and logits.dtype == jnp.float32
    print("KERNEL_OK")
</pallas_src>

<mosaic_0001>
module attributes {stable_mosaic.version = 11 : i64} {
  func.func @_fused_kernel(%arg0: memref<16x32xf32, #tpu.memory_space<vmem>>, %arg1: memref<2x8x8xf32, #tpu.memory_space<vmem>>, %arg2: memref<2x32x384xf32, #tpu.memory_space<vmem>>, %arg3: memref<2x64x32xf32, #tpu.memory_space<vmem>>, %arg4: memref<21x96xf32, #tpu.memory_space<vmem>>, %arg5: memref<96x32xf32, #tpu.memory_space<vmem>>, %arg6: memref<2x4xf32, #tpu.memory_space<vmem>>) attributes {dimension_semantics = [], scalar_prefetch = 0 : i64, scratch_operands = 0 : i64, tpu.core_type = #tpu.core_type<tc>} {
    %c0 = arith.constant 0 : index
    %c0_0 = arith.constant 0 : index
    %0 = vector.load %arg4[%c0, %c0_0] : memref<21x96xf32, #tpu.memory_space<vmem>>, vector<21x96xf32>
    %c0_1 = arith.constant 0 : index
    %c0_2 = arith.constant 0 : index
    %1 = vector.load %arg0[%c0_1, %c0_2] : memref<16x32xf32, #tpu.memory_space<vmem>>, vector<16x32xf32>
    %2 = vector.extract_strided_slice %0 {offsets = [16, 0], sizes = [1, 32], strides = [1, 1]} : vector<21x96xf32> to vector<1x32xf32>
    %3 = vector.extract_strided_slice %0 {offsets = [17, 0], sizes = [1, 32], strides = [1, 1]} : vector<21x96xf32> to vector<1x32xf32>
    %cst = arith.constant dense<0.000000e+00> : vector<16xf32>
    %4 = vector.multi_reduction <add>, %1, %cst [1] : vector<16x32xf32> to vector<16xf32>
    %5 = vector.shape_cast %4 : vector<16xf32> to vector<16x1xf32>
    %cst_3 = arith.constant 3.200000e+01 : f32
    %6 = vector.broadcast %cst_3 : f32 to vector<16x1xf32>
    %7 = arith.divf %5, %6 : vector<16x1xf32>
    %8 = vector.broadcast %7 : vector<16x1xf32> to vector<16x32xf32>
    %9 = arith.subf %1, %8 : vector<16x32xf32>
    %10 = arith.mulf %9, %9 : vector<16x32xf32>
    %cst_4 = arith.constant dense<0.000000e+00> : vector<16xf32>
    %11 = vector.multi_reduction <add>, %10, %cst_4 [1] : vector<16x32xf32> to vector<16xf32>
    %12 = vector.shape_cast %11 : vector<16xf32> to vector<16x1xf32>
    %cst_5 = arith.constant 3.200000e+01 : f32
    %13 = vector.broadcast %cst_5 : f32 to vector<16x1xf32>
    %14 = arith.divf %12, %13 : vector<16x1xf32>
    %cst_6 = arith.constant 9.99999996E-13 : f32
    %15 = vector.broadcast %cst_6 : f32 to vector<16x1xf32>
    %16 = arith.addf %14, %15 : vector<16x1xf32>
    %17 = math.rsqrt %16 : vector<16x1xf32>
    %18 = vector.broadcast %17 : vector<16x1xf32> to vector<16x32xf32>
    %19 = arith.mulf %9, %18 : vector<16x32xf32>
    %20 = vector.broadcast %2 : vector<1x32xf32> to vector<16x32xf32>
    %21 = arith.mulf %19, %20 : vector<16x32xf32>
    %22 = vector.broadcast %3 : vector<1x32xf32> to vector<16x32xf32>
    %23 = arith.addf %21, %22 : vector<16x32xf32>
    %c0_7 = arith.constant 0 : index
    %c0_8 = arith.constant 0 : index
    %c0_9 = arith.constant 0 : index
    %24 = vector.load %arg1[%c0_7, %c0_8, %c0_9] : memref<2x8x8xf32, #tpu.memory_space<vmem>>, vector<2x8x8xf32>
    %c0_10 = arith.constant 0 : index
    %c0_11 = arith.constant 0 : index
    %c0_12 = arith.constant 0 : index
    %25 = vector.load %arg2[%c0_10, %c0_11, %c0_12] : memref<2x32x384xf32, #tpu.memory_space<vmem>>, vector<1x32x384xf32>
    %26 = vector.shape_cast %25 : vector<1x32x384xf32> to vector<32x384xf32>
    %27 = vector.extract_strided_slice %26 {offsets = [0, 0], sizes = [32, 96], strides = [1, 1]} : vector<32x384xf32> to vector<32x96xf32>
    %28 = vector.extract_strided_slice %26 {offsets = [0, 128], sizes = [32, 64], strides = [1, 1]} : vector<32x384xf32> to vector<32x64xf32>
    %29 = vector.extract_strided_slice %26 {offsets = [0, 256], sizes = [32, 32], strides = [1, 1]} : vector<32x384xf32> to vector<32x32xf32>
    %c0_13 = arith.constant 0 : index
    %c0_14 = arith.constant 0 : index
    %c0_15 = arith.constant 0 : index
    %30 = vector.load %arg3[%c0_13, %c0_14, %c0_15] : memref<2x64x32xf32, #tpu.memory_space<vmem>>, vector<1x64x32xf32>
    %31 = vector.shape_cast %30 : vector<1x64x32xf32> to vector<64x32xf32>
    %cst_16 = arith.constant dense<0.000000e+00> : vector<16x96xf32>
    %32 = tpu.matmul %23, %27, %cst_16 {dimension_numbers = #tpu.dot_dimension_numbers<[1], [0], [0], [1], [0, 0, 1, 1], [], []>} : vector<16x32xf32>, vector<32x96xf32>, vector<16x96xf32> -> vector<16x96xf32>
    %33 = vector.extract_strided_slice %0 {offsets = [0, 0], sizes = [1, 96], strides = [1, 1]} : vector<21x96xf32> to vector<1x96xf32>
    %34 = vector.broadcast %33 : vector<1x96xf32> to vector<16x96xf32>
    %35 = arith.addf %32, %34 : vector<16x96xf32>
    %36 = vector.shape_cast %35 : vector<16x96xf32> to vector<2x8x96xf32>
    %cst_17 = arith.constant 0.000000e+00 : f32
    %37 = vector.broadcast %cst_17 : f32 to vector<16x32xf32>
    %38 = vector.extract_strided_slice %36 {offsets = [0, 0, 0], sizes = [2, 8, 16], strides = [1, 1, 1]} : vector<2x8x96xf32> to vector<2x8x16xf32>
    %39 = vector.extract_strided_slice %36 {offsets = [0, 0, 32], sizes = [2, 8, 16], strides = [1, 1, 1]} : vector<2x8x96xf32> to vector<2x8x16xf32>
    %40 = vector.extract_strided_slice %36 {offsets = [0, 0, 64], sizes = [2, 8, 16], strides = [1, 1, 1]} : vector<2x8x96xf32> to vector<2x8x16xf32>
    "tpu.trace_start"() <{level = 10 : i32, message = "bqd,bkd->bqk"}> : () -> ()
    %cst_18 = arith.constant dense<0.000000e+00> : vector<2x8x8xf32>
    %41 = tpu.matmul %38, %39, %cst_18 {dimension_numbers = #tpu.dot_dimension_numbers<[2], [2], [1], [1], [0, 0, 0, 1, 1, 1], [0], [0]>} : vector<2x8x16xf32>, vector<2x8x16xf32>, vector<2x8x8xf32> -> vector<2x8x8xf32>
    "tpu.trace_stop"() : () -> ()
    %cst_19 = arith.constant 2.500000e-01 : f32
    %42 = vector.broadcast %cst_19 : f32 to vector<2x8x8xf32>
    %43 = arith.mulf %41, %42 : vector<2x8x8xf32>
    %44 = arith.addf %43, %24 : vector<2x8x8xf32>
    %cst_20 = arith.constant dense<0xFF800000> : vector<2x8xf32>
    %45 = vector.multi_reduction <maximumf>, %44, %cst_20 [2] : vector<2x8x8xf32> to vector<2x8xf32>
    %46 = vector.shape_cast %45 : vector<2x8xf32> to vector<2x8x1xf32>
    %47 = vector.broadcast %46 : vector<2x8x1xf32> to vector<2x8x8xf32>
    %48 = arith.subf %44, %47 : vector<2x8x8xf32>
    %49 = math.exp %48 : vector<2x8x8xf32>
    %cst_21 = arith.constant dense<0.000000e+00> : vector<2x8xf32>
    %50 = vector.multi_reduction <add>, %49, %cst_21 [2] : vector<2x8x8xf32> to vector<2x8xf32>
    %51 = vector.shape_cast %50 : vector<2x8xf32> to vector<2x8x1xf32>
    %52 = tpu.reciprocal %51 {approx = true} : vector<2x8x1xf32> -> vector<2x8x1xf32>
    %53 = vector.broadcast %52 : vector<2x8x1xf32> to vector<2x8x8xf32>
    %54 = arith.mulf %49, %53 : vector<2x8x8xf32>
    "tpu.trace_start"() <{level = 10 : i32, message = "bqk,bkd->bqd"}> : () -> ()
    %cst_22 = arith.constant dense<0.000000e+00> : vector<2x8x16xf32>
    %55 = tpu.matmul %54, %40, %cst_22 {dimension_numbers = #tpu.dot_dimension_numbers<[2], [1], [1], [2], [0, 0, 0, 1, 1, 2], [0], [0]>} : vector<2x8x8xf32>, vector<2x8x16xf32>, vector<2x8x16xf32> -> vector<2x8x16xf32>
    "tpu.trace_stop"() : () -> ()
    %56 = vector.shape_cast %55 : vector<2x8x16xf32> to vector<16x16xf32>
    %57 = vector.extract_strided_slice %29 {offsets = [0, 0], sizes = [16, 32], strides = [1, 1]} : vector<32x32xf32> to vector<16x32xf32>
    %cst_23 = arith.constant dense<0.000000e+00> : vector<16x32xf32>
    %58 = tpu.matmul %56, %57, %cst_23 {dimension_numbers = #tpu.dot_dimension_numbers<[1], [0], [0], [1], [0, 0, 1, 1], [], []>} : vector<16x16xf32>, vector<16x32xf32>, vector<16x32xf32> -> vector<16x32xf32>
    %59 = arith.addf %37, %58 : vector<16x32xf32>
    %60 = vector.extract_strided_slice %36 {offsets = [0, 0, 16], sizes = [2, 8, 16], strides = [1, 1, 1]} : vector<2x8x96xf32> to vector<2x8x16xf32>
    %61 = vector.extract_strided_slice %36 {offsets = [0, 0, 48], sizes = [2, 8, 16], strides = [1, 1, 1]} : vector<2x8x96xf32> to vector<2x8x16xf32>
    %62 = vector.extract_strided_slice %36 {offsets = [0, 0, 80], sizes = [2, 8, 16], strides = [1, 1, 1]} : vector<2x8x96xf32> to vector<2x8x16xf32>
    "tpu.trace_start"() <{level = 10 : i32, message = "bqd,bkd->bqk"}> : () -> ()
    %cst_24 = arith.constant dense<0.000000e+00> : vector<2x8x8xf32>
    %63 = tpu.matmul %60, %61, %cst_24 {dimension_numbers = #tpu.dot_dimension_numbers<[2], [2], [1], [1], [0, 0, 0, 1, 1, 1], [0], [0]>} : vector<2x8x16xf32>, vector<2x8x16xf32>, vector<2x8x8xf32> -> vector<2x8x8xf32>
    "tpu.trace_stop"() : () -> ()
    %cst_25 = arith.constant 2.500000e-01 : f32
    %64 = vector.broadcast %cst_25 : f32 to vector<2x8x8xf32>
    %65 = arith.mulf %63, %64 : vector<2x8x8xf32>
    %66 = arith.addf %65, %24 : vector<2x8x8xf32>
    %cst_26 = arith.constant dense<0xFF800000> : vector<2x8xf32>
    %67 = vector.multi_reduction <maximumf>, %66, %cst_26 [2] : vector<2x8x8xf32> to vector<2x8xf32>
    %68 = vector.shape_cast %67 : vector<2x8xf32> to vector<2x8x1xf32>
    %69 = vector.broadcast %68 : vector<2x8x1xf32> to vector<2x8x8xf32>
    %70 = arith.subf %66, %69 : vector<2x8x8xf32>
    %71 = math.exp %70 : vector<2x8x8xf32>
    %cst_27 = arith.constant dense<0.000000e+00> : vector<2x8xf32>
    %72 = vector.multi_reduction <add>, %71, %cst_27 [2] : vector<2x8x8xf32> to vector<2x8xf32>
    %73 = vector.shape_cast %72 : vector<2x8xf32> to vector<2x8x1xf32>
    %74 = tpu.reciprocal %73 {approx = true} : vector<2x8x1xf32> -> vector<2x8x1xf32>
    %75 = vector.broadcast %74 : vector<2x8x1xf32> to vector<2x8x8xf32>
    %76 = arith.mulf %71, %75 : vector<2x8x8xf32>
    "tpu.trace_start"() <{level = 10 : i32, message = "bqk,bkd->bqd"}> : () -> ()
    %cst_28 = arith.constant dense<0.000000e+00> : vector<2x8x16xf32>
    %77 = tpu.matmul %76, %62, %cst_28 {dimension_numbers = #tpu.dot_dimension_numbers<[2], [1], [1], [2], [0, 0, 0, 1, 1, 2], [0], [0]>} : vector<2x8x8xf32>, vector<2x8x16xf32>, vector<2x8x16xf32> -> vector<2x8x16xf32>
    "tpu.trace_stop"() : () -> ()
    %78 = vector.shape_cast %77 : vector<2x8x16xf32> to vector<16x16xf32>
    %79 = vector.extract_strided_slice %29 {offsets = [16, 0], sizes = [16, 32], strides = [1, 1]} : vector<32x32xf32> to vector<16x32xf32>
    %cst_29 = arith.constant dense<0.000000e+00> : vector<16x32xf32>
    %80 = tpu.matmul %78, %79, %cst_29 {dimension_numbers = #tpu.dot_dimension_numbers<[1], [0], [0], [1], [0, 0, 1, 1], [], []>} : vector<16x16xf32>, vector<16x32xf32>, vector<16x32xf32> -> vector<16x32xf32>
    %81 = arith.addf %59, %80 : vector<16x32xf32>
    %82 = vector.extract_strided_slice %0 {offsets = [1, 0], sizes = [1, 32], strides = [1, 1]} : vector<21x96xf32> to vector<1x32xf32>
    %83 = vector.broadcast %82 : vector<1x32xf32> to vector<16x32xf32>
    %84 = arith.addf %81, %83 : vector<16x32xf32>
    %85 = arith.addf %23, %84 : vector<16x32xf32>
    %86 = vector.extract_strided_slice %0 {offsets = [2, 0], sizes = [1, 32], strides = [1, 1]} : vector<21x96xf32> to vector<1x32xf32>
    %87 = vector.extract_strided_slice %0 {offsets = [3, 0], sizes = [1, 32], strides = [1, 1]} : vector<21x96xf32> to vector<1x32xf32>
    %cst_30 = arith.constant dense<0.000000e+00> : vector<16xf32>
    %88 = vector.multi_reduction <add>, %85, %cst_30 [1] : vector<16x32xf32> to vector<16xf32>
    %89 = vector.shape_cast %88 : vector<16xf32> to vector<16x1xf32>
    %cst_31 = arith.constant 3.200000e+01 : f32
    %90 = vector.broadcast %cst_31 : f32 to vector<16x1xf32>
    %91 = arith.divf %89, %90 : vector<16x1xf32>
    %92 = vector.broadcast %91 : vector<16x1xf32> to vector<16x32xf32>
    %93 = arith.subf %85, %92 : vector<16x32xf32>
    %94 = arith.mulf %93, %93 : vector<16x32xf32>
    %cst_32 = arith.constant dense<0.000000e+00> : vector<16xf32>
    %95 = vector.multi_reduction <add>, %94, %cst_32 [1] : vector<16x32xf32> to vector<16xf32>
    %96 = vector.shape_cast %95 : vector<16xf32> to vector<16x1xf32>
    %cst_33 = arith.constant 3.200000e+01 : f32
    %97 = vector.broadcast %cst_33 : f32 to vector<16x1xf32>
    %98 = arith.divf %96, %97 : vector<16x1xf32>
    %cst_34 = arith.constant 9.99999996E-13 : f32
    %99 = vector.broadcast %cst_34 : f32 to vector<16x1xf32>
    %100 = arith.addf %98, %99 : vector<16x1xf32>
    %101 = math.rsqrt %100 : vector<16x1xf32>
    %102 = vector.broadcast %101 : vector<16x1xf32> to vector<16x32xf32>
    %103 = arith.mulf %93, %102 : vector<16x32xf32>
    %104 = vector.broadcast %86 : vector<1x32xf32> to vector<16x32xf32>
    %105 = arith.mulf %103, %104 : vector<16x32xf32>
    %106 = vector.broadcast %87 : vector<1x32xf32> to vector<16x32xf32>
    %107 = arith.addf %105, %106 : vector<16x32xf32>
    %cst_35 = arith.constant dense<0.000000e+00> : vector<16x64xf32>
    %108 = tpu.matmul %107, %28, %cst_35 {dimension_numbers = #tpu.dot_dimension_numbers<[1], [0], [0], [1], [0, 0, 1, 1], [], []>} : vector<16x32xf32>, vector<32x64xf32>, vector<16x64xf32> -> vector<16x64xf32>
    %109 = vector.extract_strided_slice %0 {offsets = [4, 0], sizes = [1, 64], strides = [1, 1]} : vector<21x96xf32> to vector<1x64xf32>
    %110 = vector.broadcast %109 : vector<1x64xf32> to vector<16x64xf32>
    %111 = arith.addf %108, %110 : vector<16x64xf32>
    %cst_36 = arith.constant 5.000000e-01 : f32
    %112 = vector.broadcast %cst_36 : f32 to vector<16x64xf32>
    %113 = arith.mulf %112, %111 : vector<16x64xf32>
    %cst_37 = arith.constant 4.471500e-02 : f32
    %114 = vector.broadcast %cst_37 : f32 to vector<16x64xf32>
    %115 = arith.mulf %114, %111 : vector<16x64xf32>
    %116 = arith.mulf %115, %111 : vector<16x64xf32>
    %117 = arith.mulf %116, %111 : vector<16x64xf32>
    %118 = arith.addf %111, %117 : vector<16x64xf32>
    %cst_38 = arith.constant 0.797884583 : f32
    %119 = vector.broadcast %cst_38 : f32 to vector<16x64xf32>
    %120 = arith.mulf %119, %118 : vector<16x64xf32>
    %121 = math.tanh %120 : vector<16x64xf32>
    %cst_39 = arith.constant 1.000000e+00 : f32
    %122 = vector.broadcast %cst_39 : f32 to vector<16x64xf32>
    %123 = arith.addf %122, %121 : vector<16x64xf32>
    %124 = arith.mulf %113, %123 : vector<16x64xf32>
    %cst_40 = arith.constant dense<0.000000e+00> : vector<16x32xf32>
    %125 = tpu.matmul %124, %31, %cst_40 {dimension_numbers = #tpu.dot_dimension_numbers<[1], [0], [0], [1], [0, 0, 1, 1], [], []>} : vector<16x64xf32>, vector<64x32xf32>, vector<16x32xf32> -> vector<16x32xf32>
    %126 = vector.extract_strided_slice %0 {offsets = [5, 0], sizes = [1, 32], strides = [1, 1]} : vector<21x96xf32> to vector<1x32xf32>
    %127 = vector.broadcast %126 : vector<1x32xf32> to vector<16x32xf32>
    %128 = arith.addf %125, %127 : vector<16x32xf32>
    %129 = arith.addf %107, %128 : vector<16x32xf32>
    %130 = vector.extract_strided_slice %0 {offsets = [6, 0], sizes = [1, 32], strides = [1, 1]} : vector<21x96xf32> to vector<1x32xf32>
    %131 = vector.extract_strided_slice %0 {offsets = [7, 0], sizes = [1, 32], strides = [1, 1]} : vector<21x96xf32> to vector<1x32xf32>
    %cst_41 = arith.constant dense<0.000000e+00> : vector<16xf32>
    %132 = vector.multi_reduction <add>, %129, %cst_41 [1] : vector<16x32xf32> to vector<16xf32>
    %133 = vector.shape_cast %132 : vector<16xf32> to vector<16x1xf32>
    %cst_42 = arith.constant 3.200000e+01 : f32
    %134 = vector.broadcast %cst_42 : f32 to vector<16x1xf32>
    %135 = arith.divf %133, %134 : vector<16x1xf32>
    %136 = vector.broadcast %135 : vector<16x1xf32> to vector<16x32xf32>
    %137 = arith.subf %129, %136 : vector<16x32xf32>
    %138 = arith.mulf %137, %137 : vector<16x32xf32>
    %cst_43 = arith.constant dense<0.000000e+00> : vector<16xf32>
    %139 = vector.multi_reduction <add>, %138, %cst_43 [1] : vector<16x32xf32> to vector<16xf32>
    %140 = vector.shape_cast %139 : vector<16xf32> to vector<16x1xf32>
    %cst_44 = arith.constant 3.200000e+01 : f32
    %141 = vector.broadcast %cst_44 : f32 to vector<16x1xf32>
    %142 = arith.divf %140, %141 : vector<16x1xf32>
    %cst_45 = arith.constant 9.99999996E-13 : f32
    %143 = vector.broadcast %cst_45 : f32 to vector<16x1xf32>
    %144 = arith.addf %142, %143 : vector<16x1xf32>
    %145 = math.rsqrt %144 : vector<16x1xf32>
    %146 = vector.broadcast %145 : vector<16x1xf32> to vector<16x32xf32>
    %147 = arith.mulf %137, %146 : vector<16x32xf32>
    %148 = vector.broadcast %130 : vector<1x32xf32> to vector<16x32xf32>
    %149 = arith.mulf %147, %148 : vector<16x32xf32>
    %150 = vector.broadcast %131 : vector<1x32xf32> to vector<16x32xf32>
    %151 = arith.addf %149, %150 : vector<16x32xf32>
    %c1 = arith.constant 1 : index
    %c0_46 = arith.constant 0 : index
    %c0_47 = arith.constant 0 : index
    %152 = vector.load %arg2[%c1, %c0_46, %c0_47] : memref<2x32x384xf32, #tpu.memory_space<vmem>>, vector<1x32x384xf32>
    %153 = vector.shape_cast %152 : vector<1x32x384xf32> to vector<32x384xf32>
    %154 = vector.extract_strided_slice %153 {offsets = [0, 0], sizes = [32, 96], strides = [1, 1]} : vector<32x384xf32> to vector<32x96xf32>
    %155 = vector.extract_strided_slice %153 {offsets = [0, 128], sizes = [32, 64], strides = [1, 1]} : vector<32x384xf32> to vector<32x64xf32>
    %156 = vector.extract_strided_slice %153 {offsets = [0, 256], sizes = [32, 32], strides = [1, 1]} : vector<32x384xf32> to vector<32x32xf32>
    %c1_48 = arith.constant 1 : index
    %c0_49 = arith.constant 0 : index
    %c0_50 = arith.constant 0 : index
    %157 = vector.load %arg3[%c1_48, %c0_49, %c0_50] : memref<2x64x32xf32, #tpu.memory_space<vmem>>, vector<1x64x32xf32>
    %158 = vector.shape_cast %157 : vector<1x64x32xf32> to vector<64x32xf32>
    %cst_51 = arith.constant dense<0.000000e+00> : vector<16x96xf32>
    %159 = tpu.matmul %151, %154, %cst_51 {dimension_numbers = #tpu.dot_dimension_numbers<[1], [0], [0], [1], [0, 0, 1, 1], [], []>} : vector<16x32xf32>, vector<32x96xf32>, vector<16x96xf32> -> vector<16x96xf32>
    %160 = vector.extract_strided_slice %0 {offsets = [8, 0], sizes = [1, 96], strides = [1, 1]} : vector<21x96xf32> to vector<1x96xf32>
    %161 = vector.broadcast %160 : vector<1x96xf32> to vector<16x96xf32>
    %162 = arith.addf %159, %161 : vector<16x96xf32>
    %163 = vector.shape_cast %162 : vector<16x96xf32> to vector<2x8x96xf32>
    %cst_52 = arith.constant 0.000000e+00 : f32
    %164 = vector.broadcast %cst_52 : f32 to vector<16x32xf32>
    %165 = vector.extract_strided_slice %163 {offsets = [0, 0, 0], sizes = [2, 8, 16], strides = [1, 1, 1]} : vector<2x8x96xf32> to vector<2x8x16xf32>
    %166 = vector.extract_strided_slice %163 {offsets = [0, 0, 32], sizes = [2, 8, 16], strides = [1, 1, 1]} : vector<2x8x96xf32> to vector<2x8x16xf32>
    %167 = vector.extract_strided_slice %163 {offsets = [0, 0, 64], sizes = [2, 8, 16], strides = [1, 1, 1]} : vector<2x8x96xf32> to vector<2x8x16xf32>
    "tpu.trace_start"() <{level = 10 : i32, message = "bqd,bkd->bqk"}> : () -> ()
    %cst_53 = arith.constant dense<0.000000e+00> : vector<2x8x8xf32>
    %168 = tpu.matmul %165, %166, %cst_53 {dimension_numbers = #tpu.dot_dimension_numbers<[2], [2], [1], [1], [0, 0, 0, 1, 1, 1], [0], [0]>} : vector<2x8x16xf32>, vector<2x8x16xf32>, vector<2x8x8xf32> -> vector<2x8x8xf32>
    "tpu.trace_stop"() : () -> ()
    %cst_54 = arith.constant 2.500000e-01 : f32
    %169 = vector.broadcast %cst_54 : f32 to vector<2x8x8xf32>
    %170 = arith.mulf %168, %169 : vector<2x8x8xf32>
    %171 = arith.addf %170, %24 : vector<2x8x8xf32>
    %cst_55 = arith.constant dense<0xFF800000> : vector<2x8xf32>
    %172 = vector.multi_reduction <maximumf>, %171, %cst_55 [2] : vector<2x8x8xf32> to vector<2x8xf32>
    %173 = vector.shape_cast %172 : vector<2x8xf32> to vector<2x8x1xf32>
    %174 = vector.broadcast %173 : vector<2x8x1xf32> to vector<2x8x8xf32>
    %175 = arith.subf %171, %174 : vector<2x8x8xf32>
    %176 = math.exp %175 : vector<2x8x8xf32>
    %cst_56 = arith.constant dense<0.000000e+00> : vector<2x8xf32>
    %177 = vector.multi_reduction <add>, %176, %cst_56 [2] : vector<2x8x8xf32> to vector<2x8xf32>
    %178 = vector.shape_cast %177 : vector<2x8xf32> to vector<2x8x1xf32>
    %179 = tpu.reciprocal %178 {approx = true} : vector<2x8x1xf32> -> vector<2x8x1xf32>
    %180 = vector.broadcast %179 : vector<2x8x1xf32> to vector<2x8x8xf32>
    %181 = arith.mulf %176, %180 : vector<2x8x8xf32>
    "tpu.trace_start"() <{level = 10 : i32, message = "bqk,bkd->bqd"}> : () -> ()
    %cst_57 = arith.constant dense<0.000000e+00> : vector<2x8x16xf32>
    %182 = tpu.matmul %181, %167, %cst_57 {dimension_numbers = #tpu.dot_dimension_numbers<[2], [1], [1], [2], [0, 0, 0, 1, 1, 2], [0], [0]>} : vector<2x8x8xf32>, vector<2x8x16xf32>, vector<2x8x16xf32> -> vector<2x8x16xf32>
    "tpu.trace_stop"() : () -> ()
    %183 = vector.shape_cast %182 : vector<2x8x16xf32> to vector<16x16xf32>
    %184 = vector.extract_strided_slice %156 {offsets = [0, 0], sizes = [16, 32], strides = [1, 1]} : vector<32x32xf32> to vector<16x32xf32>
    %cst_58 = arith.constant dense<0.000000e+00> : vector<16x32xf32>
    %185 = tpu.matmul %183, %184, %cst_58 {dimension_numbers = #tpu.dot_dimension_numbers<[1], [0], [0], [1], [0, 0, 1, 1], [], []>} : vector<16x16xf32>, vector<16x32xf32>, vector<16x32xf32> -> vector<16x32xf32>
    %186 = arith.addf %164, %185 : vector<16x32xf32>
    %187 = vector.extract_strided_slice %163 {offsets = [0, 0, 16], sizes = [2, 8, 16], strides = [1, 1, 1]} : vector<2x8x96xf32> to vector<2x8x16xf32>
    %188 = vector.extract_strided_slice %163 {offsets = [0, 0, 48], sizes = [2, 8, 16], strides = [1, 1, 1]} : vector<2x8x96xf32> to vector<2x8x16xf32>
    %189 = vector.extract_strided_slice %163 {offsets = [0, 0, 80], sizes = [2, 8, 16], strides = [1, 1, 1]} : vector<2x8x96xf32> to vector<2x8x16xf32>
    "tpu.trace_start"() <{level = 10 : i32, message = "bqd,bkd->bqk"}> : () -> ()
    %cst_59 = arith.constant dense<0.000000e+00> : vector<2x8x8xf32>
    %190 = tpu.matmul %187, %188, %cst_59 {dimension_numbers = #tpu.dot_dimension_numbers<[2], [2], [1], [1], [0, 0, 0, 1, 1, 1], [0], [0]>} : vector<2x8x16xf32>, vector<2x8x16xf32>, vector<2x8x8xf32> -> vector<2x8x8xf32>
    "tpu.trace_stop"() : () -> ()
    %cst_60 = arith.constant 2.500000e-01 : f32
    %191 = vector.broadcast %cst_60 : f32 to vector<2x8x8xf32>
    %192 = arith.mulf %190, %191 : vector<2x8x8xf32>
    %193 = arith.addf %192, %24 : vector<2x8x8xf32>
    %cst_61 = arith.constant dense<0xFF800000> : vector<2x8xf32>
    %194 = vector.multi_reduction <maximumf>, %193, %cst_61 [2] : vector<2x8x8xf32> to vector<2x8xf32>
    %195 = vector.shape_cast %194 : vector<2x8xf32> to vector<2x8x1xf32>
    %196 = vector.broadcast %195 : vector<2x8x1xf32> to vector<2x8x8xf32>
    %197 = arith.subf %193, %196 : vector<2x8x8xf32>
    %198 = math.exp %197 : vector<2x8x8xf32>
    %cst_62 = arith.constant dense<0.000000e+00> : vector<2x8xf32>
    %199 = vector.multi_reduction <add>, %198, %cst_62 [2] : vector<2x8x8xf32> to vector<2x8xf32>
    %200 = vector.shape_cast %199 : vector<2x8xf32> to vector<2x8x1xf32>
    %201 = tpu.reciprocal %200 {approx = true} : vector<2x8x1xf32> -> vector<2x8x1xf32>
    %202 = vector.broadcast %201 : vector<2x8x1xf32> to vector<2x8x8xf32>
    %203 = arith.mulf %198, %202 : vector<2x8x8xf32>
    "tpu.trace_start"() <{level = 10 : i32, message = "bqk,bkd->bqd"}> : () -> ()
    %cst_63 = arith.constant dense<0.000000e+00> : vector<2x8x16xf32>
    %204 = tpu.matmul %203, %189, %cst_63 {dimension_numbers = #tpu.dot_dimension_numbers<[2], [1], [1], [2], [0, 0, 0, 1, 1, 2], [0], [0]>} : vector<2x8x8xf32>, vector<2x8x16xf32>, vector<2x8x16xf32> -> vector<2x8x16xf32>
    "tpu.trace_stop"() : () -> ()
    %205 = vector.shape_cast %204 : vector<2x8x16xf32> to vector<16x16xf32>
    %206 = vector.extract_strided_slice %156 {offsets = [16, 0], sizes = [16, 32], strides = [1, 1]} : vector<32x32xf32> to vector<16x32xf32>
    %cst_64 = arith.constant dense<0.000000e+00> : vector<16x32xf32>
    %207 = tpu.matmul %205, %206, %cst_64 {dimension_numbers = #tpu.dot_dimension_numbers<[1], [0], [0], [1], [0, 0, 1, 1], [], []>} : vector<16x16xf32>, vector<16x32xf32>, vector<16x32xf32> -> vector<16x32xf32>
    %208 = arith.addf %186, %207 : vector<16x32xf32>
    %209 = vector.extract_strided_slice %0 {offsets = [9, 0], sizes = [1, 32], strides = [1, 1]} : vector<21x96xf32> to vector<1x32xf32>
    %210 = vector.broadcast %209 : vector<1x32xf32> to vector<16x32xf32>
    %211 = arith.addf %208, %210 : vector<16x32xf32>
    %212 = arith.addf %151, %211 : vector<16x32xf32>
    %213 = vector.extract_strided_slice %0 {offsets = [10, 0], sizes = [1, 32], strides = [1, 1]} : vector<21x96xf32> to vector<1x32xf32>
    %214 = vector.extract_strided_slice %0 {offsets = [11, 0], sizes = [1, 32], strides = [1, 1]} : vector<21x96xf32> to vector<1x32xf32>
    %cst_65 = arith.constant dense<0.000000e+00> : vector<16xf32>
    %215 = vector.multi_reduction <add>, %212, %cst_65 [1] : vector<16x32xf32> to vector<16xf32>
    %216 = vector.shape_cast %215 : vector<16xf32> to vector<16x1xf32>
    %cst_66 = arith.constant 3.200000e+01 : f32
    %217 = vector.broadcast %cst_66 : f32 to vector<16x1xf32>
    %218 = arith.divf %216, %217 : vector<16x1xf32>
    %219 = vector.broadcast %218 : vector<16x1xf32> to vector<16x32xf32>
    %220 = arith.subf %212, %219 : vector<16x32xf32>
    %221 = arith.mulf %220, %220 : vector<16x32xf32>
    %cst_67 = arith.constant dense<0.000000e+00> : vector<16xf32>
    %222 = vector.multi_reduction <add>, %221, %cst_67 [1] : vector<16x32xf32> to vector<16xf32>
    %223 = vector.shape_cast %222 : vector<16xf32> to vector<16x1xf32>
    %cst_68 = arith.constant 3.200000e+01 : f32
    %224 = vector.broadcast %cst_68 : f32 to vector<16x1xf32>
    %225 = arith.divf %223, %224 : vector<16x1xf32>
    %cst_69 = arith.constant 9.99999996E-13 : f32
    %226 = vector.broadcast %cst_69 : f32 to vector<16x1xf32>
    %227 = arith.addf %225, %226 : vector<16x1xf32>
    %228 = math.rsqrt %227 : vector<16x1xf32>
    %229 = vector.broadcast %228 : vector<16x1xf32> to vector<16x32xf32>
    %230 = arith.mulf %220, %229 : vector<16x32xf32>
    %231 = vector.broadcast %213 : vector<1x32xf32> to vector<16x32xf32>
    %232 = arith.mulf %230, %231 : vector<16x32xf32>
    %233 = vector.broadcast %214 : vector<1x32xf32> to vector<16x32xf32>
    %234 = arith.addf %232, %233 : vector<16x32xf32>
    %cst_70 = arith.constant dense<0.000000e+00> : vector<16x64xf32>
    %235 = tpu.matmul %234, %155, %cst_70 {dimension_numbers = #tpu.dot_dimension_numbers<[1], [0], [0], [1], [0, 0, 1, 1], [], []>} : vector<16x32xf32>, vector<32x64xf32>, vector<16x64xf32> -> vector<16x64xf32>
    %236 = vector.extract_strided_slice %0 {offsets = [12, 0], sizes = [1, 64], strides = [1, 1]} : vector<21x96xf32> to vector<1x64xf32>
    %237 = vector.broadcast %236 : vector<1x64xf32> to vector<16x64xf32>
    %238 = arith.addf %235, %237 : vector<16x64xf32>
    %cst_71 = arith.constant 5.000000e-01 : f32
    %239 = vector.broadcast %cst_71 : f32 to vector<16x64xf32>
    %240 = arith.mulf %239, %238 : vector<16x64xf32>
    %cst_72 = arith.constant 4.471500e-02 : f32
    %241 = vector.broadcast %cst_72 : f32 to vector<16x64xf32>
    %242 = arith.mulf %241, %238 : vector<16x64xf32>
    %243 = arith.mulf %242, %238 : vector<16x64xf32>
    %244 = arith.mulf %243, %238 : vector<16x64xf32>
    %245 = arith.addf %238, %244 : vector<16x64xf32>
    %cst_73 = arith.constant 0.797884583 : f32
    %246 = vector.broadcast %cst_73 : f32 to vector<16x64xf32>
    %247 = arith.mulf %246, %245 : vector<16x64xf32>
    %248 = math.tanh %247 : vector<16x64xf32>
    %cst_74 = arith.constant 1.000000e+00 : f32
    %249 = vector.broadcast %cst_74 : f32 to vector<16x64xf32>
    %250 = arith.addf %249, %248 : vector<16x64xf32>
    %251 = arith.mulf %240, %250 : vector<16x64xf32>
    %cst_75 = arith.constant dense<0.000000e+00> : vector<16x32xf32>
    %252 = tpu.matmul %251, %158, %cst_75 {dimension_numbers = #tpu.dot_dimension_numbers<[1], [0], [0], [1], [0, 0, 1, 1], [], []>} : vector<16x64xf32>, vector<64x32xf32>, vector<16x32xf32> -> vector<16x32xf32>
    %253 = vector.extract_strided_slice %0 {offsets = [13, 0], sizes = [1, 32], strides = [1, 1]} : vector<21x96xf32> to vector<1x32xf32>
    %254 = vector.broadcast %253 : vector<1x32xf32> to vector<16x32xf32>
    %255 = arith.addf %252, %254 : vector<16x32xf32>
    %256 = arith.addf %234, %255 : vector<16x32xf32>
    %257 = vector.extract_strided_slice %0 {offsets = [14, 0], sizes = [1, 32], strides = [1, 1]} : vector<21x96xf32> to vector<1x32xf32>
    %258 = vector.extract_strided_slice %0 {offsets = [15, 0], sizes = [1, 32], strides = [1, 1]} : vector<21x96xf32> to vector<1x32xf32>
    %cst_76 = arith.constant dense<0.000000e+00> : vector<16xf32>
    %259 = vector.multi_reduction <add>, %256, %cst_76 [1] : vector<16x32xf32> to vector<16xf32>
    %260 = vector.shape_cast %259 : vector<16xf32> to vector<16x1xf32>
    %cst_77 = arith.constant 3.200000e+01 : f32
    %261 = vector.broadcast %cst_77 : f32 to vector<16x1xf32>
    %262 = arith.divf %260, %261 : vector<16x1xf32>
    %263 = vector.broadcast %262 : vector<16x1xf32> to vector<16x32xf32>
    %264 = arith.subf %256, %263 : vector<16x32xf32>
    %265 = arith.mulf %264, %264 : vector<16x32xf32>
    %cst_78 = arith.constant dense<0.000000e+00> : vector<16xf32>
    %266 = vector.multi_reduction <add>, %265, %cst_78 [1] : vector<16x32xf32> to vector<16xf32>
    %267 = vector.shape_cast %266 : vector<16xf32> to vector<16x1xf32>
    %cst_79 = arith.constant 3.200000e+01 : f32
    %268 = vector.broadcast %cst_79 : f32 to vector<16x1xf32>
    %269 = arith.divf %267, %268 : vector<16x1xf32>
    %cst_80 = arith.constant 9.99999996E-13 : f32
    %270 = vector.broadcast %cst_80 : f32 to vector<16x1xf32>
    %271 = arith.addf %269, %270 : vector<16x1xf32>
    %272 = math.rsqrt %271 : vector<16x1xf32>
    %273 = vector.broadcast %272 : vector<16x1xf32> to vector<16x32xf32>
    %274 = arith.mulf %264, %273 : vector<16x32xf32>
    %275 = vector.broadcast %257 : vector<1x32xf32> to vector<16x32xf32>
    %276 = arith.mulf %274, %275 : vector<16x32xf32>
    %277 = vector.broadcast %258 : vector<1x32xf32> to vector<16x32xf32>
    %278 = arith.addf %276, %277 : vector<16x32xf32>
    %c0_81 = arith.constant 0 : index
    %c0_82 = arith.constant 0 : index
    %279 = vector.load %arg5[%c0_81, %c0_82] : memref<96x32xf32, #tpu.memory_space<vmem>>, vector<96x32xf32>
    %280 = vector.extract_strided_slice %279 {offsets = [0, 0], sizes = [32, 32], strides = [1, 1]} : vector<96x32xf32> to vector<32x32xf32>
    %281 = vector.extract_strided_slice %279 {offsets = [32, 0], sizes = [32, 32], strides = [1, 1]} : vector<96x32xf32> to vector<32x32xf32>
    %282 = vector.extract_strided_slice %279 {offsets = [64, 0], sizes = [32, 4], strides = [1, 1]} : vector<96x32xf32> to vector<32x4xf32>
    %cst_83 = arith.constant dense<0.000000e+00> : vector<16x32xf32>
    %283 = tpu.matmul %278, %280, %cst_83 {dimension_numbers = #tpu.dot_dimension_numbers<[1], [0], [0], [1], [0, 0, 1, 1], [], []>} : vector<16x32xf32>, vector<32x32xf32>, vector<16x32xf32> -> vector<16x32xf32>
    %284 = vector.extract_strided_slice %0 {offsets = [18, 0], sizes = [1, 32], strides = [1, 1]} : vector<21x96xf32> to vector<1x32xf32>
    %285 = vector.broadcast %284 : vector<1x32xf32> to vector<16x32xf32>
    %286 = arith.addf %283, %285 : vector<16x32xf32>
    %287 = math.tanh %286 : vector<16x32xf32>
    %cst_84 = arith.constant 0.000000e+00 : f32
    %288 = vector.broadcast %cst_84 : f32 to vector<16x32xf32>
    %289 = arith.maximumf %287, %288 : vector<16x32xf32>
    %cst_85 = arith.constant dense<0.000000e+00> : vector<16x32xf32>
    %290 = tpu.matmul %289, %281, %cst_85 {dimension_numbers = #tpu.dot_dimension_numbers<[1], [0], [0], [1], [0, 0, 1, 1], [], []>} : vector<16x32xf32>, vector<32x32xf32>, vector<16x32xf32> -> vector<16x32xf32>
    %291 = vector.extract_strided_slice %0 {offsets = [19, 0], sizes = [1, 32], strides = [1, 1]} : vector<21x96xf32> to vector<1x32xf32>
    %292 = vector.broadcast %291 : vector<1x32xf32> to vector<16x32xf32>
    %293 = arith.addf %290, %292 : vector<16x32xf32>
    %cst_86 = arith.constant 0.000000e+00 : f32
    %294 = vector.broadcast %cst_86 : f32 to vector<16x32xf32>
    %295 = arith.maximumf %293, %294 : vector<16x32xf32>
    %cst_87 = arith.constant dense<0.000000e+00> : vector<16x4xf32>
    %296 = tpu.matmul %295, %282, %cst_87 {dimension_numbers = #tpu.dot_dimension_numbers<[1], [0], [0], [1], [0, 0, 1, 1], [], []>} : vector<16x32xf32>, vector<32x4xf32>, vector<16x4xf32> -> vector<16x4xf32>
    %297 = vector.extract_strided_slice %0 {offsets = [20, 0], sizes = [1, 4], strides = [1, 1]} : vector<21x96xf32> to vector<1x4xf32>
    %298 = vector.broadcast %297 : vector<1x4xf32> to vector<16x4xf32>
    %299 = arith.addf %296, %298 : vector<16x4xf32>
    %300 = vector.shape_cast %299 : vector<16x4xf32> to vector<2x8x4xf32>
    %301 = vector.extract_strided_slice %300 {offsets = [0, 0, 0], sizes = [2, 1, 4], strides = [1, 1, 1]} : vector<2x8x4xf32> to vector<2x1x4xf32>
    %302 = vector.shape_cast %301 : vector<2x1x4xf32> to vector<2x4xf32>
    %c0_88 = arith.constant 0 : index
    %c0_89 = arith.constant 0 : index
    %303 = vector.load %arg6[%c0_88, %c0_89] : memref<2x4xf32, #tpu.memory_space<vmem>>, vector<2x4xf32>
    tpu.vector_store %arg6[%c0_88, %c0_89], %302 {strides = array<i32>} : memref<2x4xf32, #tpu.memory_space<vmem>>, vector<2x4xf32>,
    return
  }
}

</mosaic_0001>

<llo_original>
// kernel: wrime_bert_forward.1
$region0: #{wrime_bert_forward.1}
  #allocation0 [shape = 'u32[]', space=smem, size = 0x4, offset = 0x4, fixed_abs, tag = 'smem constant byte address 0x4 - core index']
  #allocation1 [shape = 'u32[72,128]{1,0:T(1,128)}', space=vmem, size = 0x9000, scoped, tag = 'internal scratch']
  %s0 = inlined_call_operand.vmem [shape: f32[16,32], index: 0, kind: input, shape index: {}]
  %s1 = inlined_call_operand.vmem [shape: f32[2,8,8], index: 1, kind: input, shape index: {}]
  %s2 = inlined_call_operand.vmem [shape: f32[2,32,384], index: 2, kind: input, shape index: {}]
  %s3 = inlined_call_operand.vmem [shape: f32[2,64,32], index: 3, kind: input, shape index: {}]
  %s4 = inlined_call_operand.vmem [shape: f32[21,96], index: 4, kind: input, shape index: {}]
  %s5 = inlined_call_operand.vmem [shape: f32[96,32], index: 5, kind: input, shape index: {}]
  %s6 = inlined_call_operand.hbm [shape: f32[2,4], index: 6, kind: output, shape index: {}]
  %s7 = sld [smem:[#allocation0]]
  $region34: #{wrime_bert_forward.1} parent=0
    _
  %s9 = ssub.s32 1, %s7
  %s10 = scalar_select 0, %s9, %s7
  $region1: #{wrime_bert_forward.1} parent=0
    #allocation2 [shape = 'u8[1024]{0}', space=vmem, size = 0x400, scoped, tag = 'output window, operand 0, single buffered']
    #allocation3 [shape = 's32[1]{0}', space=sflag, size = 0x4, scoped, tag = 'scoped memory for wrime_bert_forward.1']
    %11 = vsyncpa [#allocation3], 0
    // Predicated region
    $region2: #{wrime_bert_forward.1} parent=1 // pred_check
      _
    $region3: #{wrime_bert_forward.1} parent=1 // pred_check_branch
      %13 = sbr.rel (0) target = $region5
    $region4: #{wrime_bert_forward.1} parent=1 // pred_region
      _
    $region5: #{wrime_bert_forward.1} parent=1 // pred_fallthru
      _
    // Predicated region
    $region6: #{wrime_bert_forward.1} parent=1 // pred_check
      _
    $region7: #{wrime_bert_forward.1} parent=1 // pred_check_branch
      %15 = sbr.rel (0) target = $region9
    $region8: #{wrime_bert_forward.1} parent=1 // pred_region
      _
    $region9: #{wrime_bert_forward.1} parent=1 // pred_fallthru
      _
    // Predicated region
    $region10: #{wrime_bert_forward.1} parent=1 // pred_check
      _
    $region11: #{wrime_bert_forward.1} parent=1 // pred_check_branch
      %17 = sbr.rel (0) target = $region13
    $region12: #{wrime_bert_forward.1} parent=1 // pred_region
      _
    $region13: #{wrime_bert_forward.1} parent=1 // pred_fallthru
      _
    // Predicated region
    $region14: #{wrime_bert_forward.1} parent=1 // pred_check
      _
    $region15: #{wrime_bert_forward.1} parent=1 // pred_check_branch
      %19 = sbr.rel (0) target = $region17
    $region16: #{wrime_bert_forward.1} parent=1 // pred_region
      _
    $region17: #{wrime_bert_forward.1} parent=1 // pred_fallthru
      _
    // Predicated region
    $region18: #{wrime_bert_forward.1} parent=1 // pred_check
      _
    $region19: #{wrime_bert_forward.1} parent=1 // pred_check_branch
      %21 = sbr.rel (0) target = $region21
    $region20: #{wrime_bert_forward.1} parent=1 // pred_region
      _
    $region21: #{wrime_bert_forward.1} parent=1 // pred_fallthru
      _
    // Predicated region
    $region22: #{wrime_bert_forward.1} parent=1 // pred_check
      _
    $region23: #{wrime_bert_forward.1} parent=1 // pred_check_branch
      %23 = sbr.rel (0) target = $region25
    $region24: #{wrime_bert_forward.1} parent=1 // pred_region
      _
    $region25: #{wrime_bert_forward.1} parent=1 // pred_fallthru
      _
    %v24 = vld [vmem:[%s4] sm:$0xff]
    %v25 = vld [vmem:[%s4 + $0x8] sm:$0xff]
    %v26 = vld [vmem:[%s4 + $0x10] sm:$0x1f]
    %v27 = vld [vmem:[%s0] sm:$0xff]
    %v28 = vld [vmem:[%s0 + $0x8] sm:$0xff]
    %vm29 = vcmask 261120
    %v30 = vsel %vm29, %v27, 0.0
    %31 = vadd.xlane.f32.xlu0 %v30
    %v32 = vpop.xlane.xlu0 %31
    %v33 = vsel %vm29, %v28, 0.0
    %34 = vadd.xlane.f32.xlu0 %v33
    %v35 = vpop.xlane.xlu0 %34
    %v36 = vrcp.pop 32.0
    %v37 = vmul.f32 32.0, %v36
    %v38 = vsub.f32 1.0, %v37
    %v39 = vmul.f32 %v36, %v38
    %v40 = vadd.f32 %v36, %v39
    %vm41 = vweird.f32 %v36
    %v42 = vsel %vm41, %v36, %v40
    %v43 = vmul.f32 %v32, %v42
    %v44 = vmul.f32 %v35, %v42
    %v45 = vsub.f32 %v27, %v43
    %v46 = vsub.f32 %v28, %v44
    %v47 = vmul.f32 %v45, %v45
    %v48 = vmul.f32 %v46, %v46
    %v49 = vsel %vm29, %v47, 0.0
    %50 = vadd.xlane.f32.xlu0 %v49
    %v51 = vpop.xlane.xlu0 %50
    %v52 = vsel %vm29, %v48, 0.0
    %53 = vadd.xlane.f32.xlu0 %v52
    %v54 = vpop.xlane.xlu0 %53
    %v55 = vmul.f32 %v51, %v42
    %v56 = vmul.f32 %v54, %v42
    %v57 = vadd.f32 %v55, 1e-12
    %v58 = vadd.f32 %v56, 1e-12
    %v59 = vrsqrt.pop %v57
    %v60 = vmul.f32 %v59, %v57
    %v61 = vmul.f32 %v60, %v59
    %v62 = vmul.f32 0.5, %v61
    %v63 = vsub.f32 1.5, %v62
    %v64 = vmul.f32 %v59, %v63
    %vm65 = vweird.f32 %v57
    %vm66 = vweird.f32 %v59
    %vm67 = vmor %vm65, %vm66
    %v68 = vsel %vm67, %v59, %v64
    %v69 = vrsqrt.pop %v58
    %v70 = vmul.f32 %v69, %v58
    %v71 = vmul.f32 %v70, %v69
    %v72 = vmul.f32 0.5, %v71
    %v73 = vsub.f32 1.5, %v72
    %v74 = vmul.f32 %v69, %v73
    %vm75 = vweird.f32 %v58
    %vm76 = vweird.f32 %v69
    %vm77 = vmor %vm75, %vm76
    %v78 = vsel %vm77, %v69, %v74
    %v79 = vmul.f32 %v45, %v68
    %v80 = vmul.f32 %v46, %v78
    %v81 = vperm.slane %v26, 0
    %v82 = vmul.f32 %v79, %v81
    %v83 = vmul.f32 %v80, %v81
    %v84 = vperm.slane %v26, 1
    %v85 = vadd.f32 %v82, %v84
    %v86 = vadd.f32 %v83, %v84
    %v87 = vld [vmem:[%s1] sm:$0xff]
    %v88 = vld [vmem:[%s1 + $0x8] sm:$0xff]
    %v89 = vld [vmem:[%s2] sm:$0xff]
    %v90 = vld [vmem:[%s2 + $0x8] sm:$0xff]
    %v91 = vld [vmem:[%s2 + $0x10] sm:$0xff]
    %v92 = vld [vmem:[%s2 + $0x18] sm:$0xff]
    %v93 = vld [vmem:[%s2 + $0x20] sm:$0xff]
    %v94 = vld [vmem:[%s2 + $0x28] sm:$0xff]
    %v95 = vld [vmem:[%s2 + $0x30] sm:$0xff]
    %v96 = vld [vmem:[%s2 + $0x38] sm:$0xff]
    %v97 = vld [vmem:[%s2 + $0x40] sm:$0xff]
    %v98 = vld [vmem:[%s2 + $0x48] sm:$0xff]
    %v99 = vld [vmem:[%s2 + $0x50] sm:$0xff]
    %v100 = vld [vmem:[%s2 + $0x58] sm:$0xff]
    %v101 = vld [vmem:[%s3] sm:$0xff]
    %v102 = vld [vmem:[%s3 + $0x8] sm:$0xff]
    %v103 = vld [vmem:[%s3 + $0x10] sm:$0xff]
    %v104 = vld [vmem:[%s3 + $0x18] sm:$0xff]
    %v105 = vld [vmem:[%s3 + $0x20] sm:$0xff]
    %v106 = vld [vmem:[%s3 + $0x28] sm:$0xff]
    %v107 = vld [vmem:[%s3 + $0x30] sm:$0xff]
    %v108 = vld [vmem:[%s3 + $0x38] sm:$0xff]
    %v109 = vperm.slane %v24, 0
    %v111 = vsel %vm29, %v85, 0
    %v114 = vsel %vm29, %v86, 0
    %116 = vmatpush.msra.mxu0 0.0
    %117 = vmatpush.msra.mxu0 0.0
    %118 = vmatpush.msra.mxu0 0.0
    %119 = vmatpush.msra.mxu0 0.0
    %120 = vmatpush.msra.mxu0 0.0
    %121 = vmatpush.msra.mxu0 0.0
    %122 = vmatpush.msra.mxu0 0.0
    %123 = vmatpush.msra.mxu0 0.0
    %124 = vmatpush.msra.mxu0 0.0
    %125 = vmatpush.msra.mxu0 0.0
    %126 = vmatpush.msra.mxu0 0.0
    %127 = vmatpush.msra.mxu0 0.0
    %128 = vmatpush.msra.mxu0 %v98
    %129 = vmatpush.msra.mxu0 %v95
    %130 = vmatpush.msra.mxu0 %v92
    %131 = vmatpush.msra.mxu0 %v89
    %132 = vmatmul.f32.gmra.mxu0 %v111
    %v133 = vpop.f32.mrf.mxu0
    %v134 = vadd.f32 %v109, %v133
    %135 = vmatmul.f32.gmra.mxu0 %v114
    %v136 = vpop.f32.mrf.mxu0
    %v137 = vadd.f32 %v109, %v136
    %138 = vdwg.mxu0
    %140 = vrot.lane.b32.xlu0 %v134, 96
    %v141 = vpop.permute.xlu0 %140
    %vm142 = vcmask 130048
    %v143 = vsel %vm142, %v134, 0
    %v145 = vsel %vm142, %v141, 0
    %147 = vmatpush.xpose.msra.mxu0 0.0
    %148 = vmatpush.xpose.msra.mxu0 0.0
    %149 = vmatpush.xpose.msra.mxu0 0.0
    %150 = vmatpush.xpose.msra.mxu0 0.0
    %151 = vmatpush.xpose.msra.mxu0 0.0
    %152 = vmatpush.xpose.msra.mxu0 0.0
    %153 = vmatpush.xpose.msra.mxu0 0.0
    %154 = vmatpush.xpose.msra.mxu0 0.0
    %155 = vmatpush.xpose.msra.mxu0 0.0
    %156 = vmatpush.xpose.msra.mxu0 0.0
    %157 = vmatpush.xpose.msra.mxu0 0.0
    %158 = vmatpush.xpose.msra.mxu0 0.0
    %159 = vmatpush.xpose.msra.mxu0 0.0
    %160 = vmatpush.xpose.msra.mxu0 0.0
    %161 = vmatpush.xpose.msra.mxu0 0.0
    %162 = vmatpush.xpose.msra.mxu0 %v145
    %163 = vmatmul.f32.gmra.mxu0 %v143
    %v164 = vpop.f32.mrf.mxu0
    %v165 = vadd.f32 0.0, %v164
    %166 = vdwg.mxu0
    %168 = vrot.lane.b32.xlu0 %v137, 96
    %v169 = vpop.permute.xlu0 %168
    %v170 = vsel %vm142, %v137, 0
    %v172 = vsel %vm142, %v169, 0
    %174 = vmatpush.xpose.msra.mxu0 0.0
    %175 = vmatpush.xpose.msra.mxu0 0.0
    %176 = vmatpush.xpose.msra.mxu0 0.0
    %177 = vmatpush.xpose.msra.mxu0 0.0
    %178 = vmatpush.xpose.msra.mxu0 0.0
    %179 = vmatpush.xpose.msra.mxu0 0.0
    %180 = vmatpush.xpose.msra.mxu0 0.0
    %181 = vmatpush.xpose.msra.mxu0 0.0
    %182 = vmatpush.xpose.msra.mxu0 0.0
    %183 = vmatpush.xpose.msra.mxu0 0.0
    %184 = vmatpush.xpose.msra.mxu0 0.0
    %185 = vmatpush.xpose.msra.mxu0 0.0
    %186 = vmatpush.xpose.msra.mxu0 0.0
    %187 = vmatpush.xpose.msra.mxu0 0.0
    %188 = vmatpush.xpose.msra.mxu0 0.0
    %189 = vmatpush.xpose.msra.mxu0 %v172
    %190 = vmatmul.f32.gmra.mxu0 %v170
    %v191 = vpop.f32.mrf.mxu0
    %v192 = vadd.f32 0.0, %v191
    %193 = vdwg.mxu0
    %v194 = vmul.f32 %v165, 0.25
    %v195 = vmul.f32 %v192, 0.25
    %v196 = vadd.f32 %v194, %v87
    %v197 = vadd.f32 %v195, %v88
    %vm198 = vcmask 64512
    %v199 = vsel %vm198, %v196, -inf
    %200 = vmax.xlane.f32.xlu0 %v199
    %v201 = vpop.xlane.xlu0 %200
    %v202 = vsel %vm198, %v197, -inf
    %203 = vmax.xlane.f32.xlu0 %v202
    %v204 = vpop.xlane.xlu0 %203
    %v205 = vsub.f32 %v196, %v201
    %v206 = vsub.f32 %v197, %v204
    %v207 = vmul.f32 %v205, 1.442695
    %v208 = vpow.pop %v207
    %v209 = vmul.f32 %v206, 1.442695
    %v210 = vpow.pop %v209
    %v211 = vsel %vm198, %v208, 0.0
    %212 = vadd.xlane.f32.xlu0 %v211
    %v213 = vpop.xlane.xlu0 %212
    %v214 = vsel %vm198, %v210, 0.0
    %215 = vadd.xlane.f32.xlu0 %v214
    %v216 = vpop.xlane.xlu0 %215
    %v217 = vrcp.pop %v213
    %v218 = vrcp.pop %v216
    %v219 = vmul.f32 %v208, %v217
    %v220 = vmul.f32 %v210, %v218
    %221 = vrot.lane.b32.xlu0 %v134, 64
    %v222 = vpop.permute.xlu0 %221
    %v225 = vsel %vm198, %v219, 0
    %227 = vmatpush.msra.mxu0 0.0
    %228 = vmatpush.msra.mxu0 0.0
    %229 = vmatpush.msra.mxu0 0.0
    %230 = vmatpush.msra.mxu0 0.0
    %231 = vmatpush.msra.mxu0 0.0
    %232 = vmatpush.msra.mxu0 0.0
    %233 = vmatpush.msra.mxu0 0.0
    %234 = vmatpush.msra.mxu0 0.0
    %235 = vmatpush.msra.mxu0 0.0
    %236 = vmatpush.msra.mxu0 0.0
    %237 = vmatpush.msra.mxu0 0.0
    %238 = vmatpush.msra.mxu0 0.0
    %239 = vmatpush.msra.mxu0 0.0
    %240 = vmatpush.msra.mxu0 0.0
    %241 = vmatpush.msra.mxu0 0.0
    %242 = vmatpush.msra.mxu0 %v222
    %243 = vmatmul.f32.gmra.mxu0 %v225
    %v244 = vpop.f32.mrf.mxu0
    %v245 = vadd.f32 0.0, %v244
    %246 = vdwg.mxu0
    %247 = vrot.lane.b32.xlu0 %v137, 64
    %v248 = vpop.permute.xlu0 %247
    %v251 = vsel %vm198, %v220, 0
    %253 = vmatpush.msra.mxu0 0.0
    %254 = vmatpush.msra.mxu0 0.0
    %255 = vmatpush.msra.mxu0 0.0
    %256 = vmatpush.msra.mxu0 0.0
    %257 = vmatpush.msra.mxu0 0.0
    %258 = vmatpush.msra.mxu0 0.0
    %259 = vmatpush.msra.mxu0 0.0
    %260 = vmatpush.msra.mxu0 0.0
    %261 = vmatpush.msra.mxu0 0.0
    %262 = vmatpush.msra.mxu0 0.0
    %263 = vmatpush.msra.mxu0 0.0
    %264 = vmatpush.msra.mxu0 0.0
    %265 = vmatpush.msra.mxu0 0.0
    %266 = vmatpush.msra.mxu0 0.0
    %267 = vmatpush.msra.mxu0 0.0
    %268 = vmatpush.msra.mxu0 %v248
    %269 = vmatmul.f32.gmra.mxu0 %v251
    %v270 = vpop.f32.mrf.mxu0
    %v271 = vadd.f32 0.0, %v270
    %272 = vdwg.mxu0
    %273 = vrot.lane.b32.xlu0 %v134, 112
    %v274 = vpop.permute.xlu0 %273
    %275 = vrot.lane.b32.xlu0 %v134, 80
    %v276 = vpop.permute.xlu0 %275
    %v277 = vsel %vm142, %v274, 0
    %v279 = vsel %vm142, %v276, 0
    %281 = vmatpush.xpose.msra.mxu0 0.0
    %282 = vmatpush.xpose.msra.mxu0 0.0
    %283 = vmatpush.xpose.msra.mxu0 0.0
    %284 = vmatpush.xpose.msra.mxu0 0.0
    %285 = vmatpush.xpose.msra.mxu0 0.0
    %286 = vmatpush.xpose.msra.mxu0 0.0
    %287 = vmatpush.xpose.msra.mxu0 0.0
    %288 = vmatpush.xpose.msra.mxu0 0.0
    %289 = vmatpush.xpose.msra.mxu0 0.0
    %290 = vmatpush.xpose.msra.mxu0 0.0
    %291 = vmatpush.xpose.msra.mxu0 0.0
    %292 = vmatpush.xpose.msra.mxu0 0.0
    %293 = vmatpush.xpose.msra.mxu0 0.0
    %294 = vmatpush.xpose.msra.mxu0 0.0
    %295 = vmatpush.xpose.msra.mxu0 0.0
    %296 = vmatpush.xpose.msra.mxu0 %v279
    %297 = vmatmul.f32.gmra.mxu0 %v277
    %v298 = vpop.f32.mrf.mxu0
    %v299 = vadd.f32 0.0, %v298
    %300 = vdwg.mxu0
    %301 = vrot.lane.b32.xlu0 %v137, 112
    %v302 = vpop.permute.xlu0 %301
    %303 = vrot.lane.b32.xlu0 %v137, 80
    %v304 = vpop.permute.xlu0 %303
    %v305 = vsel %vm142, %v302, 0
    %v307 = vsel %vm142, %v304, 0
    %309 = vmatpush.xpose.msra.mxu0 0.0
    %310 = vmatpush.xpose.msra.mxu0 0.0
    %311 = vmatpush.xpose.msra.mxu0 0.0
    %312 = vmatpush.xpose.msra.mxu0 0.0
    %313 = vmatpush.xpose.msra.mxu0 0.0
    %314 = vmatpush.xpose.msra.mxu0 0.0
    %315 = vmatpush.xpose.msra.mxu0 0.0
    %316 = vmatpush.xpose.msra.mxu0 0.0
    %317 = vmatpush.xpose.msra.mxu0 0.0
    %318 = vmatpush.xpose.msra.mxu0 0.0
    %319 = vmatpush.xpose.msra.mxu0 0.0
    %320 = vmatpush.xpose.msra.mxu0 0.0
    %321 = vmatpush.xpose.msra.mxu0 0.0
    %322 = vmatpush.xpose.msra.mxu0 0.0
    %323 = vmatpush.xpose.msra.mxu0 0.0
    %324 = vmatpush.xpose.msra.mxu0 %v307
    %325 = vmatmul.f32.gmra.mxu0 %v305
    %v326 = vpop.f32.mrf.mxu0
    %v327 = vadd.f32 0.0, %v326
    %328 = vdwg.mxu0
    %v329 = vmul.f32 %v299, 0.25
    %v330 = vmul.f32 %v327, 0.25
    %v331 = vadd.f32 %v329, %v87
    %v332 = vadd.f32 %v330, %v88
    %v333 = vsel %vm198, %v331, -inf
    %334 = vmax.xlane.f32.xlu0 %v333
    %v335 = vpop.xlane.xlu0 %334
    %v336 = vsel %vm198, %v332, -inf
    %337 = vmax.xlane.f32.xlu0 %v336
    %v338 = vpop.xlane.xlu0 %337
    %v339 = vsub.f32 %v331, %v335
    %v340 = vsub.f32 %v332, %v338
    %v341 = vmul.f32 %v339, 1.442695
    %v342 = vpow.pop %v341
    %v343 = vmul.f32 %v340, 1.442695
    %v344 = vpow.pop %v343
    %v345 = vsel %vm198, %v342, 0.0
    %346 = vadd.xlane.f32.xlu0 %v345
    %v347 = vpop.xlane.xlu0 %346
    %v348 = vsel %vm198, %v344, 0.0
    %349 = vadd.xlane.f32.xlu0 %v348
    %v350 = vpop.xlane.xlu0 %349
    %v351 = vrcp.pop %v347
    %v352 = vrcp.pop %v350
    %v353 = vmul.f32 %v342, %v351
    %v354 = vmul.f32 %v344, %v352
    %355 = vrot.lane.b32.xlu0 %v134, 48
    %v356 = vpop.permute.xlu0 %355
    %v359 = vsel %vm198, %v353, 0
    %361 = vmatpush.msra.mxu0 0.0
    %362 = vmatpush.msra.mxu0 0.0
    %363 = vmatpush.msra.mxu0 0.0
    %364 = vmatpush.msra.mxu0 0.0
    %365 = vmatpush.msra.mxu0 0.0
    %366 = vmatpush.msra.mxu0 0.0
    %367 = vmatpush.msra.mxu0 0.0
    %368 = vmatpush.msra.mxu0 0.0
    %369 = vmatpush.msra.mxu0 0.0
    %370 = vmatpush.msra.mxu0 0.0
    %371 = vmatpush.msra.mxu0 0.0
    %372 = vmatpush.msra.mxu0 0.0
    %373 = vmatpush.msra.mxu0 0.0
    %374 = vmatpush.msra.mxu0 0.0
    %375 = vmatpush.msra.mxu0 0.0
    %376 = vmatpush.msra.mxu0 %v356
    %377 = vmatmul.f32.gmra.mxu0 %v359
    %v378 = vpop.f32.mrf.mxu0
    %v379 = vadd.f32 0.0, %v378
    %380 = vdwg.mxu0
    %381 = vrot.lane.b32.xlu0 %v137, 48
    %v382 = vpop.permute.xlu0 %381
    %v385 = vsel %vm198, %v354, 0
    %387 = vmatpush.msra.mxu0 0.0
    %388 = vmatpush.msra.mxu0 0.0
    %389 = vmatpush.msra.mxu0 0.0
    %390 = vmatpush.msra.mxu0 0.0
    %391 = vmatpush.msra.mxu0 0.0
    %392 = vmatpush.msra.mxu0 0.0
    %393 = vmatpush.msra.mxu0 0.0
    %394 = vmatpush.msra.mxu0 0.0
    %395 = vmatpush.msra.mxu0 0.0
    %396 = vmatpush.msra.mxu0 0.0
    %397 = vmatpush.msra.mxu0 0.0
    %398 = vmatpush.msra.mxu0 0.0
    %399 = vmatpush.msra.mxu0 0.0
    %400 = vmatpush.msra.mxu0 0.0
    %401 = vmatpush.msra.mxu0 0.0
    %402 = vmatpush.msra.mxu0 %v382
    %403 = vmatmul.f32.gmra.mxu0 %v385
    %v404 = vpop.f32.mrf.mxu0
    %v405 = vadd.f32 0.0, %v404
    %406 = vdwg.mxu0
    %v408 = vsel %vm142, %v379, 0
    %v411 = vsel %vm142, %v405, 0
    %413 = vmatpush.msra.mxu0 0.0
    %414 = vmatpush.msra.mxu0 0.0
    %415 = vmatpush.msra.mxu0 0.0
    %416 = vmatpush.msra.mxu0 0.0
    %417 = vmatpush.msra.mxu0 0.0
    %418 = vmatpush.msra.mxu0 0.0
    %419 = vmatpush.msra.mxu0 0.0
    %420 = vmatpush.msra.mxu0 0.0
    %421 = vmatpush.msra.mxu0 0.0
    %422 = vmatpush.msra.mxu0 0.0
    %423 = vmatpush.msra.mxu0 0.0
    %424 = vmatpush.msra.mxu0 0.0
    %425 = vmatpush.msra.mxu0 0.0
    %426 = vmatpush.msra.mxu0 0.0
    %427 = vmatpush.msra.mxu0 %v100
    %428 = vmatpush.msra.mxu0 %v97
    %429 = vmatmul.f32.gmra.mxu0 %v408
    %v430 = vpop.f32.mrf.mxu0
    %v431 = vadd.f32 0.0, %v430
    %432 = vmatmul.f32.gmra.mxu0 %v411
    %v433 = vpop.f32.mrf.mxu0
    %v434 = vadd.f32 0.0, %v433
    %435 = vdwg.mxu0
    %v437 = vsel %vm142, %v245, 0
    %v440 = vsel %vm142, %v271, 0
    %442 = vmatpush.msra.mxu0 0.0
    %443 = vmatpush.msra.mxu0 0.0
    %444 = vmatpush.msra.mxu0 0.0
    %445 = vmatpush.msra.mxu0 0.0
    %446 = vmatpush.msra.mxu0 0.0
    %447 = vmatpush.msra.mxu0 0.0
    %448 = vmatpush.msra.mxu0 0.0
    %449 = vmatpush.msra.mxu0 0.0
    %450 = vmatpush.msra.mxu0 0.0
    %451 = vmatpush.msra.mxu0 0.0
    %452 = vmatpush.msra.mxu0 0.0
    %453 = vmatpush.msra.mxu0 0.0
    %454 = vmatpush.msra.mxu0 0.0
    %455 = vmatpush.msra.mxu0 0.0
    %456 = vmatpush.msra.mxu0 %v94
    %457 = vmatpush.msra.mxu0 %v91
    %458 = vmatmul.f32.gmra.mxu0 %v437
    %v459 = vpop.f32.mrf.mxu0
    %v460 = vadd.f32 %v431, %v459
    %461 = vmatmul.f32.gmra.mxu0 %v440
    %v462 = vpop.f32.mrf.mxu0
    %v463 = vadd.f32 %v434, %v462
    %464 = vdwg.mxu0
    %v465 = vperm.slane %v24, 1
    %v466 = vadd.f32 %v460, %v465
    %v467 = vadd.f32 %v463, %v465
    %v468 = vadd.f32 %v85, %v466
    %v469 = vadd.f32 %v86, %v467
    %v470 = vsel %vm29, %v468, 0.0
    %471 = vadd.xlane.f32.xlu0 %v470
    %v472 = vpop.xlane.xlu0 %471
    %v473 = vsel %vm29, %v469, 0.0
    %474 = vadd.xlane.f32.xlu0 %v473
    %v475 = vpop.xlane.xlu0 %474
    %v476 = vmul.f32 %v472, %v42
    %v477 = vmul.f32 %v475, %v42
    %v478 = vsub.f32 %v468, %v476
    %v479 = vsub.f32 %v469, %v477
    %v480 = vmul.f32 %v478, %v478
    %v481 = vmul.f32 %v479, %v479
    %v482 = vsel %vm29, %v480, 0.0
    %483 = vadd.xlane.f32.xlu0 %v482
    %v484 = vpop.xlane.xlu0 %483
    %v485 = vsel %vm29, %v481, 0.0
    %486 = vadd.xlane.f32.xlu0 %v485
    %v487 = vpop.xlane.xlu0 %486
    %v488 = vmul.f32 %v484, %v42
    %v489 = vmul.f32 %v487, %v42
    %v490 = vadd.f32 %v488, 1e-12
    %v491 = vadd.f32 %v489, 1e-12
    %v492 = vrsqrt.pop %v490
    %v493 = vmul.f32 %v492, %v490
    %v494 = vmul.f32 %v493, %v492
    %v495 = vmul.f32 0.5, %v494
    %v496 = vsub.f32 1.5, %v495
    %v497 = vmul.f32 %v492, %v496
    %vm498 = vweird.f32 %v490
    %vm499 = vweird.f32 %v492
    %vm500 = vmor %vm498, %vm499
    %v501 = vsel %vm500, %v492, %v497
    %v502 = vrsqrt.pop %v491
    %v503 = vmul.f32 %v502, %v491
    %v504 = vmul.f32 %v503, %v502
    %v505 = vmul.f32 0.5, %v504
    %v506 = vsub.f32 1.5, %v505
    %v507 = vmul.f32 %v502, %v506
    %vm508 = vweird.f32 %v491
    %vm509 = vweird.f32 %v502
    %vm510 = vmor %vm508, %vm509
    %v511 = vsel %vm510, %v502, %v507
    %v512 = vmul.f32 %v478, %v501
    %v513 = vmul.f32 %v479, %v511
    %v514 = vperm.slane %v24, 2
    %v515 = vmul.f32 %v512, %v514
    %v516 = vmul.f32 %v513, %v514
    %v517 = vperm.slane %v24, 3
    %v518 = vadd.f32 %v515, %v517
    %v519 = vadd.f32 %v516, %v517
    %v520 = vperm.slane %v24, 4
    %v522 = vsel %vm29, %v518, 0
    %v525 = vsel %vm29, %v519, 0
    %527 = vmatpush.msra.mxu0 0.0
    %528 = vmatpush.msra.mxu0 0.0
    %529 = vmatpush.msra.mxu0 0.0
    %530 = vmatpush.msra.mxu0 0.0
    %531 = vmatpush.msra.mxu0 0.0
    %532 = vmatpush.msra.mxu0 0.0
    %533 = vmatpush.msra.mxu0 0.0
    %534 = vmatpush.msra.mxu0 0.0
    %535 = vmatpush.msra.mxu0 0.0
    %536 = vmatpush.msra.mxu0 0.0
    %537 = vmatpush.msra.mxu0 0.0
    %538 = vmatpush.msra.mxu0 0.0
    %539 = vmatpush.msra.mxu0 %v99
    %540 = vmatpush.msra.mxu0 %v96
    %541 = vmatpush.msra.mxu0 %v93
    %542 = vmatpush.msra.mxu0 %v90
    %543 = vmatmul.f32.gmra.mxu0 %v522
    %v544 = vpop.f32.mrf.mxu0
    %v545 = vadd.f32 %v520, %v544
    %546 = vmatmul.f32.gmra.mxu0 %v525
    %v547 = vpop.f32.mrf.mxu0
    %v548 = vadd.f32 %v520, %v547
    %549 = vdwg.mxu0
    %v550 = vmul.f32 %v545, 0.5
    %v551 = vmul.f32 %v548, 0.5
    %v552 = vmul.f32 %v545, 0.044715
    %v553 = vmul.f32 %v548, 0.044715
    %v554 = vmul.f32 %v552, %v545
    %v555 = vmul.f32 %v553, %v548
    %v556 = vmul.f32 %v554, %v545
    %v557 = vmul.f32 %v555, %v548
    %v558 = vadd.f32 %v545, %v556
    %v559 = vadd.f32 %v548, %v557
    %v560 = vmul.f32 %v558, 0.7978846
    %v561 = vmul.f32 %v559, 0.7978846
    %v562 = vtanh.pop %v560
    %v563 = vtanh.pop %v561
    %v564 = vadd.f32 %v562, 1.0
    %v565 = vadd.f32 %v563, 1.0
    %v566 = vmul.f32 %v550, %v564
    %v567 = vmul.f32 %v551, %v565
    %v568 = vperm.slane %v24, 5
    %vm569 = vcmask 523264
    %v571 = vsel %vm569, %v566, 0
    %v574 = vsel %vm569, %v567, 0
    %576 = vmatpush.msra.mxu0 0.0
    %577 = vmatpush.msra.mxu0 0.0
    %578 = vmatpush.msra.mxu0 0.0
    %579 = vmatpush.msra.mxu0 0.0
    %580 = vmatpush.msra.mxu0 0.0
    %581 = vmatpush.msra.mxu0 0.0
    %582 = vmatpush.msra.mxu0 0.0
    %583 = vmatpush.msra.mxu0 0.0
    %584 = vmatpush.msra.mxu0 %v108
    %585 = vmatpush.msra.mxu0 %v107
    %586 = vmatpush.msra.mxu0 %v106
    %587 = vmatpush.msra.mxu0 %v105
    %588 = vmatpush.msra.mxu0 %v104
    %589 = vmatpush.msra.mxu0 %v103
    %590 = vmatpush.msra.mxu0 %v102
    %591 = vmatpush.msra.mxu0 %v101
    %592 = vmatmul.f32.gmra.mxu0 %v571
    %v593 = vpop.f32.mrf.mxu0
    %v594 = vadd.f32 %v568, %v593
    %595 = vmatmul.f32.gmra.mxu0 %v574
    %v596 = vpop.f32.mrf.mxu0
    %v597 = vadd.f32 %v568, %v596
    %598 = vdwg.mxu0
    %v599 = vadd.f32 %v518, %v594
    %v600 = vadd.f32 %v519, %v597
    %v601 = vsel %vm29, %v599, 0.0
    %602 = vadd.xlane.f32.xlu0 %v601
    %v603 = vpop.xlane.xlu0 %602
    %v604 = vsel %vm29, %v600, 0.0
    %605 = vadd.xlane.f32.xlu0 %v604
    %v606 = vpop.xlane.xlu0 %605
    %v607 = vmul.f32 %v603, %v42
    %v608 = vmul.f32 %v606, %v42
    %v609 = vsub.f32 %v599, %v607
    %v610 = vsub.f32 %v600, %v608
    %v611 = vmul.f32 %v609, %v609
    %v612 = vmul.f32 %v610, %v610
    %v613 = vsel %vm29, %v611, 0.0
    %614 = vadd.xlane.f32.xlu0 %v613
    %v615 = vpop.xlane.xlu0 %614
    %v616 = vsel %vm29, %v612, 0.0
    %617 = vadd.xlane.f32.xlu0 %v616
    %v618 = vpop.xlane.xlu0 %617
    %v619 = vmul.f32 %v615, %v42
    %v620 = vmul.f32 %v618, %v42
    %v621 = vadd.f32 %v619, 1e-12
    %v622 = vadd.f32 %v620, 1e-12
    %v623 = vrsqrt.pop %v621
    %v624 = vmul.f32 %v623, %v621
    %v625 = vmul.f32 %v624, %v623
    %v626 = vmul.f32 0.5, %v625
    %v627 = vsub.f32 1.5, %v626
    %v628 = vmul.f32 %v623, %v627
    %vm629 = vweird.f32 %v621
    %vm630 = vweird.f32 %v623
    %vm631 = vmor %vm629, %vm630
    %v632 = vsel %vm631, %v623, %v628
    %v633 = vrsqrt.pop %v622
    %v634 = vmul.f32 %v633, %v622
    %v635 = vmul.f32 %v634, %v633
    %v636 = vmul.f32 0.5, %v635
    %v637 = vsub.f32 1.5, %v636
    %v638 = vmul.f32 %v633, %v637
    %vm639 = vweird.f32 %v622
    %vm640 = vweird.f32 %v633
    %vm641 = vmor %vm639, %vm640
    %v642 = vsel %vm641, %v633, %v638
    %v643 = vmul.f32 %v609, %v632
    %v644 = vmul.f32 %v610, %v642
    %v645 = vperm.slane %v24, 6
    %v646 = vmul.f32 %v643, %v645
    %v647 = vmul.f32 %v644, %v645
    %v648 = vperm.slane %v24, 7
    %v649 = vadd.f32 %v646, %v648
    %v650 = vadd.f32 %v647, %v648
    %s651 = scalar_lea.vmem %s2, 96
    %v652 = vld [vmem:[%s651] sm:$0xff]
    %v653 = vld [vmem:[%s651 + $0x8] sm:$0xff]
    %v654 = vld [vmem:[%s651 + $0x10] sm:$0xff]
    %v655 = vld [vmem:[%s651 + $0x18] sm:$0xff]
    %v656 = vld [vmem:[%s651 + $0x20] sm:$0xff]
    %v657 = vld [vmem:[%s651 + $0x28] sm:$0xff]
    %v658 = vld [vmem:[%s651 + $0x30] sm:$0xff]
    %v659 = vld [vmem:[%s651 + $0x38] sm:$0xff]
    %v660 = vld [vmem:[%s651 + $0x40] sm:$0xff]
    %v661 = vld [vmem:[%s651 + $0x48] sm:$0xff]
    %v662 = vld [vmem:[%s651 + $0x50] sm:$0xff]
    %v663 = vld [vmem:[%s651 + $0x58] sm:$0xff]
    %s664 = scalar_lea.vmem %s3, 64
    %v665 = vld [vmem:[%s664] sm:$0xff]
    %v666 = vld [vmem:[%s664 + $0x8] sm:$0xff]
    %v667 = vld [vmem:[%s664 + $0x10] sm:$0xff]
    %v668 = vld [vmem:[%s664 + $0x18] sm:$0xff]
    %v669 = vld [vmem:[%s664 + $0x20] sm:$0xff]
    %v670 = vld [vmem:[%s664 + $0x28] sm:$0xff]
    %v671 = vld [vmem:[%s664 + $0x30] sm:$0xff]
    %v672 = vld [vmem:[%s664 + $0x38] sm:$0xff]
    %v673 = vperm.slane %v25, 0
    %v675 = vsel %vm29, %v649, 0
    %v678 = vsel %vm29, %v650, 0
    %680 = vmatpush.msra.mxu0 0.0
    %681 = vmatpush.msra.mxu0 0.0
    %682 = vmatpush.msra.mxu0 0.0
    %683 = vmatpush.msra.mxu0 0.0
    %684 = vmatpush.msra.mxu0 0.0
    %685 = vmatpush.msra.mxu0 0.0
    %686 = vmatpush.msra.mxu0 0.0
    %687 = vmatpush.msra.mxu0 0.0
    %688 = vmatpush.msra.mxu0 0.0
    %689 = vmatpush.msra.mxu0 0.0
    %690 = vmatpush.msra.mxu0 0.0
    %691 = vmatpush.msra.mxu0 0.0
    %692 = vmatpush.msra.mxu0 %v661
    %693 = vmatpush.msra.mxu0 %v658
    %694 = vmatpush.msra.mxu0 %v655
    %695 = vmatpush.msra.mxu0 %v652
    %696 = vmatmul.f32.gmra.mxu0 %v675
    %v697 = vpop.f32.mrf.mxu0
    %v698 = vadd.f32 %v673, %v697
    %699 = vmatmul.f32.gmra.mxu0 %v678
    %v700 = vpop.f32.mrf.mxu0
    %v701 = vadd.f32 %v673, %v700
    %702 = vdwg.mxu0
    %704 = vrot.lane.b32.xlu0 %v698, 96
    %v705 = vpop.permute.xlu0 %704
    %v706 = vsel %vm142, %v698, 0
    %v708 = vsel %vm142, %v705, 0
    %710 = vmatpush.xpose.msra.mxu0 0.0
    %711 = vmatpush.xpose.msra.mxu0 0.0
    %712 = vmatpush.xpose.msra.mxu0 0.0
    %713 = vmatpush.xpose.msra.mxu0 0.0
    %714 = vmatpush.xpose.msra.mxu0 0.0
    %715 = vmatpush.xpose.msra.mxu0 0.0
    %716 = vmatpush.xpose.msra.mxu0 0.0
    %717 = vmatpush.xpose.msra.mxu0 0.0
    %718 = vmatpush.xpose.msra.mxu0 0.0
    %719 = vmatpush.xpose.msra.mxu0 0.0
    %720 = vmatpush.xpose.msra.mxu0 0.0
    %721 = vmatpush.xpose.msra.mxu0 0.0
    %722 = vmatpush.xpose.msra.mxu0 0.0
    %723 = vmatpush.xpose.msra.mxu0 0.0
    %724 = vmatpush.xpose.msra.mxu0 0.0
    %725 = vmatpush.xpose.msra.mxu0 %v708
    %726 = vmatmul.f32.gmra.mxu0 %v706
    %v727 = vpop.f32.mrf.mxu0
    %v728 = vadd.f32 0.0, %v727
    %729 = vdwg.mxu0
    %731 = vrot.lane.b32.xlu0 %v701, 96
    %v732 = vpop.permute.xlu0 %731
    %v733 = vsel %vm142, %v701, 0
    %v735 = vsel %vm142, %v732, 0
    %737 = vmatpush.xpose.msra.mxu0 0.0
    %738 = vmatpush.xpose.msra.mxu0 0.0
    %739 = vmatpush.xpose.msra.mxu0 0.0
    %740 = vmatpush.xpose.msra.mxu0 0.0
    %741 = vmatpush.xpose.msra.mxu0 0.0
    %742 = vmatpush.xpose.msra.mxu0 0.0
    %743 = vmatpush.xpose.msra.mxu0 0.0
    %744 = vmatpush.xpose.msra.mxu0 0.0
    %745 = vmatpush.xpose.msra.mxu0 0.0
    %746 = vmatpush.xpose.msra.mxu0 0.0
    %747 = vmatpush.xpose.msra.mxu0 0.0
    %748 = vmatpush.xpose.msra.mxu0 0.0
    %749 = vmatpush.xpose.msra.mxu0 0.0
    %750 = vmatpush.xpose.msra.mxu0 0.0
    %751 = vmatpush.xpose.msra.mxu0 0.0
    %752 = vmatpush.xpose.msra.mxu0 %v735
    %753 = vmatmul.f32.gmra.mxu0 %v733
    %v754 = vpop.f32.mrf.mxu0
    %v755 = vadd.f32 0.0, %v754
    %756 = vdwg.mxu0
    %v757 = vmul.f32 %v728, 0.25
    %v758 = vmul.f32 %v755, 0.25
    %v759 = vadd.f32 %v757, %v87
    %v760 = vadd.f32 %v758, %v88
    %v761 = vsel %vm198, %v759, -inf
    %762 = vmax.xlane.f32.xlu0 %v761
    %v763 = vpop.xlane.xlu0 %762
    %v764 = vsel %vm198, %v760, -inf
    %765 = vmax.xlane.f32.xlu0 %v764
    %v766 = vpop.xlane.xlu0 %765
    %v767 = vsub.f32 %v759, %v763
    %v768 = vsub.f32 %v760, %v766
    %v769 = vmul.f32 %v767, 1.442695
    %v770 = vpow.pop %v769
    %v771 = vmul.f32 %v768, 1.442695
    %v772 = vpow.pop %v771
    %v773 = vsel %vm198, %v770, 0.0
    %774 = vadd.xlane.f32.xlu0 %v773
    %v775 = vpop.xlane.xlu0 %774
    %v776 = vsel %vm198, %v772, 0.0
    %777 = vadd.xlane.f32.xlu0 %v776
    %v778 = vpop.xlane.xlu0 %777
    %v779 = vrcp.pop %v775
    %v780 = vrcp.pop %v778
    %v781 = vmul.f32 %v770, %v779
    %v782 = vmul.f32 %v772, %v780
    %783 = vrot.lane.b32.xlu0 %v698, 64
    %v784 = vpop.permute.xlu0 %783
    %v787 = vsel %vm198, %v781, 0
    %789 = vmatpush.msra.mxu0 0.0
    %790 = vmatpush.msra.mxu0 0.0
    %791 = vmatpush.msra.mxu0 0.0
    %792 = vmatpush.msra.mxu0 0.0
    %793 = vmatpush.msra.mxu0 0.0
    %794 = vmatpush.msra.mxu0 0.0
    %795 = vmatpush.msra.mxu0 0.0
    %796 = vmatpush.msra.mxu0 0.0
    %797 = vmatpush.msra.mxu0 0.0
    %798 = vmatpush.msra.mxu0 0.0
    %799 = vmatpush.msra.mxu0 0.0
    %800 = vmatpush.msra.mxu0 0.0
    %801 = vmatpush.msra.mxu0 0.0
    %802 = vmatpush.msra.mxu0 0.0
    %803 = vmatpush.msra.mxu0 0.0
    %804 = vmatpush.msra.mxu0 %v784
    %805 = vmatmul.f32.gmra.mxu0 %v787
    %v806 = vpop.f32.mrf.mxu0
    %v807 = vadd.f32 0.0, %v806
    %808 = vdwg.mxu0
    %809 = vrot.lane.b32.xlu0 %v701, 64
    %v810 = vpop.permute.xlu0 %809
    %v813 = vsel %vm198, %v782, 0
    %815 = vmatpush.msra.mxu0 0.0
    %816 = vmatpush.msra.mxu0 0.0
    %817 = vmatpush.msra.mxu0 0.0
    %818 = vmatpush.msra.mxu0 0.0
    %819 = vmatpush.msra.mxu0 0.0
    %820 = vmatpush.msra.mxu0 0.0
    %821 = vmatpush.msra.mxu0 0.0
    %822 = vmatpush.msra.mxu0 0.0
    %823 = vmatpush.msra.mxu0 0.0
    %824 = vmatpush.msra.mxu0 0.0
    %825 = vmatpush.msra.mxu0 0.0
    %826 = vmatpush.msra.mxu0 0.0
    %827 = vmatpush.msra.mxu0 0.0
    %828 = vmatpush.msra.mxu0 0.0
    %829 = vmatpush.msra.mxu0 0.0
    %830 = vmatpush.msra.mxu0 %v810
    %831 = vmatmul.f32.gmra.mxu0 %v813
    %v832 = vpop.f32.mrf.mxu0
    %v833 = vadd.f32 0.0, %v832
    %834 = vdwg.mxu0
    %835 = vrot.lane.b32.xlu0 %v698, 112
    %v836 = vpop.permute.xlu0 %835
    %837 = vrot.lane.b32.xlu0 %v698, 80
    %v838 = vpop.permute.xlu0 %837
    %v839 = vsel %vm142, %v836, 0
    %v841 = vsel %vm142, %v838, 0
    %843 = vmatpush.xpose.msra.mxu0 0.0
    %844 = vmatpush.xpose.msra.mxu0 0.0
    %845 = vmatpush.xpose.msra.mxu0 0.0
    %846 = vmatpush.xpose.msra.mxu0 0.0
    %847 = vmatpush.xpose.msra.mxu0 0.0
    %848 = vmatpush.xpose.msra.mxu0 0.0
    %849 = vmatpush.xpose.msra.mxu0 0.0
    %850 = vmatpush.xpose.msra.mxu0 0.0
    %851 = vmatpush.xpose.msra.mxu0 0.0
    %852 = vmatpush.xpose.msra.mxu0 0.0
    %853 = vmatpush.xpose.msra.mxu0 0.0
    %854 = vmatpush.xpose.msra.mxu0 0.0
    %855 = vmatpush.xpose.msra.mxu0 0.0
    %856 = vmatpush.xpose.msra.mxu0 0.0
    %857 = vmatpush.xpose.msra.mxu0 0.0
    %858 = vmatpush.xpose.msra.mxu0 %v841
    %859 = vmatmul.f32.gmra.mxu0 %v839
    %v860 = vpop.f32.mrf.mxu0
    %v861 = vadd.f32 0.0, %v860
    %862 = vdwg.mxu0
    %863 = vrot.lane.b32.xlu0 %v701, 112
    %v864 = vpop.permute.xlu0 %863
    %865 = vrot.lane.b32.xlu0 %v701, 80
    %v866 = vpop.permute.xlu0 %865
    %v867 = vsel %vm142, %v864, 0
    %v869 = vsel %vm142, %v866, 0
    %871 = vmatpush.xpose.msra.mxu0 0.0
    %872 = vmatpush.xpose.msra.mxu0 0.0
    %873 = vmatpush.xpose.msra.mxu0 0.0
    %874 = vmatpush.xpose.msra.mxu0 0.0
    %875 = vmatpush.xpose.msra.mxu0 0.0
    %876 = vmatpush.xpose.msra.mxu0 0.0
    %877 = vmatpush.xpose.msra.mxu0 0.0
    %878 = vmatpush.xpose.msra.mxu0 0.0
    %879 = vmatpush.xpose.msra.mxu0 0.0
    %880 = vmatpush.xpose.msra.mxu0 0.0
    %881 = vmatpush.xpose.msra.mxu0 0.0
    %882 = vmatpush.xpose.msra.mxu0 0.0
    %883 = vmatpush.xpose.msra.mxu0 0.0
    %884 = vmatpush.xpose.msra.mxu0 0.0
    %885 = vmatpush.xpose.msra.mxu0 0.0
    %886 = vmatpush.xpose.msra.mxu0 %v869
    %887 = vmatmul.f32.gmra.mxu0 %v867
    %v888 = vpop.f32.mrf.mxu0
    %v889 = vadd.f32 0.0, %v888
    %890 = vdwg.mxu0
    %v891 = vmul.f32 %v861, 0.25
    %v892 = vmul.f32 %v889, 0.25
    %v893 = vadd.f32 %v891, %v87
    %v894 = vadd.f32 %v892, %v88
    %v895 = vsel %vm198, %v893, -inf
    %896 = vmax.xlane.f32.xlu0 %v895
    %v897 = vpop.xlane.xlu0 %896
    %v898 = vsel %vm198, %v894, -inf
    %899 = vmax.xlane.f32.xlu0 %v898
    %v900 = vpop.xlane.xlu0 %899
    %v901 = vsub.f32 %v893, %v897
    %v902 = vsub.f32 %v894, %v900
    %v903 = vmul.f32 %v901, 1.442695
    %v904 = vpow.pop %v903
    %v905 = vmul.f32 %v902, 1.442695
    %v906 = vpow.pop %v905
    %v907 = vsel %vm198, %v904, 0.0
    %908 = vadd.xlane.f32.xlu0 %v907
    %v909 = vpop.xlane.xlu0 %908
    %v910 = vsel %vm198, %v906, 0.0
    %911 = vadd.xlane.f32.xlu0 %v910
    %v912 = vpop.xlane.xlu0 %911
    %v913 = vrcp.pop %v909
    %v914 = vrcp.pop %v912
    %v915 = vmul.f32 %v904, %v913
    %v916 = vmul.f32 %v906, %v914
    %917 = vrot.lane.b32.xlu0 %v698, 48
    %v918 = vpop.permute.xlu0 %917
    %v921 = vsel %vm198, %v915, 0
    %923 = vmatpush.msra.mxu0 0.0
    %924 = vmatpush.msra.mxu0 0.0
    %925 = vmatpush.msra.mxu0 0.0
    %926 = vmatpush.msra.mxu0 0.0
    %927 = vmatpush.msra.mxu0 0.0
    %928 = vmatpush.msra.mxu0 0.0
    %929 = vmatpush.msra.mxu0 0.0
    %930 = vmatpush.msra.mxu0 0.0
    %931 = vmatpush.msra.mxu0 0.0
    %932 = vmatpush.msra.mxu0 0.0
    %933 = vmatpush.msra.mxu0 0.0
    %934 = vmatpush.msra.mxu0 0.0
    %935 = vmatpush.msra.mxu0 0.0
    %936 = vmatpush.msra.mxu0 0.0
    %937 = vmatpush.msra.mxu0 0.0
    %938 = vmatpush.msra.mxu0 %v918
    %939 = vmatmul.f32.gmra.mxu0 %v921
    %v940 = vpop.f32.mrf.mxu0
    %v941 = vadd.f32 0.0, %v940
    %942 = vdwg.mxu0
    %943 = vrot.lane.b32.xlu0 %v701, 48
    %v944 = vpop.permute.xlu0 %943
    %v947 = vsel %vm198, %v916, 0
    %949 = vmatpush.msra.mxu0 0.0
    %950 = vmatpush.msra.mxu0 0.0
    %951 = vmatpush.msra.mxu0 0.0
    %952 = vmatpush.msra.mxu0 0.0
    %953 = vmatpush.msra.mxu0 0.0
    %954 = vmatpush.msra.mxu0 0.0
    %955 = vmatpush.msra.mxu0 0.0
    %956 = vmatpush.msra.mxu0 0.0
    %957 = vmatpush.msra.mxu0 0.0
    %958 = vmatpush.msra.mxu0 0.0
    %959 = vmatpush.msra.mxu0 0.0
    %960 = vmatpush.msra.mxu0 0.0
    %961 = vmatpush.msra.mxu0 0.0
    %962 = vmatpush.msra.mxu0 0.0
    %963 = vmatpush.msra.mxu0 0.0
    %964 = vmatpush.msra.mxu0 %v944
    %965 = vmatmul.f32.gmra.mxu0 %v947
    %v966 = vpop.f32.mrf.mxu0
    %v967 = vadd.f32 0.0, %v966
    %968 = vdwg.mxu0
    %v970 = vsel %vm142, %v941, 0
    %v973 = vsel %vm142, %v967, 0
    %975 = vmatpush.msra.mxu0 0.0
    %976 = vmatpush.msra.mxu0 0.0
    %977 = vmatpush.msra.mxu0 0.0
    %978 = vmatpush.msra.mxu0 0.0
    %979 = vmatpush.msra.mxu0 0.0
    %980 = vmatpush.msra.mxu0 0.0
    %981 = vmatpush.msra.mxu0 0.0
    %982 = vmatpush.msra.mxu0 0.0
    %983 = vmatpush.msra.mxu0 0.0
    %984 = vmatpush.msra.mxu0 0.0
    %985 = vmatpush.msra.mxu0 0.0
    %986 = vmatpush.msra.mxu0 0.0
    %987 = vmatpush.msra.mxu0 0.0
    %988 = vmatpush.msra.mxu0 0.0
    %989 = vmatpush.msra.mxu0 %v663
    %990 = vmatpush.msra.mxu0 %v660
    %991 = vmatmul.f32.gmra.mxu0 %v970
    %v992 = vpop.f32.mrf.mxu0
    %v993 = vadd.f32 0.0, %v992
    %994 = vmatmul.f32.gmra.mxu0 %v973
    %v995 = vpop.f32.mrf.mxu0
    %v996 = vadd.f32 0.0, %v995
    %997 = vdwg.mxu0
    %v999 = vsel %vm142, %v807, 0
    %v1002 = vsel %vm142, %v833, 0
    %1004 = vmatpush.msra.mxu0 0.0
    %1005 = vmatpush.msra.mxu0 0.0
    %1006 = vmatpush.msra.mxu0 0.0
    %1007 = vmatpush.msra.mxu0 0.0
    %1008 = vmatpush.msra.mxu0 0.0
    %1009 = vmatpush.msra.mxu0 0.0
    %1010 = vmatpush.msra.mxu0 0.0
    %1011 = vmatpush.msra.mxu0 0.0
    %1012 = vmatpush.msra.mxu0 0.0
    %1013 = vmatpush.msra.mxu0 0.0
    %1014 = vmatpush.msra.mxu0 0.0
    %1015 = vmatpush.msra.mxu0 0.0
    %1016 = vmatpush.msra.mxu0 0.0
    %1017 = vmatpush.msra.mxu0 0.0
    %1018 = vmatpush.msra.mxu0 %v657
    %1019 = vmatpush.msra.mxu0 %v654
    %1020 = vmatmul.f32.gmra.mxu0 %v999
    %v1021 = vpop.f32.mrf.mxu0
    %v1022 = vadd.f32 %v993, %v1021
    %1023 = vmatmul.f32.gmra.mxu0 %v1002
    %v1024 = vpop.f32.mrf.mxu0
    %v1025 = vadd.f32 %v996, %v1024
    %1026 = vdwg.mxu0
    %v1027 = vperm.slane %v25, 1
    %v1028 = vadd.f32 %v1022, %v1027
    %v1029 = vadd.f32 %v1025, %v1027
    %v1030 = vadd.f32 %v649, %v1028
    %v1031 = vadd.f32 %v650, %v1029
    %v1032 = vsel %vm29, %v1030, 0.0
    %1033 = vadd.xlane.f32.xlu0 %v1032
    %v1034 = vpop.xlane.xlu0 %1033
    %v1035 = vsel %vm29, %v1031, 0.0
    %1036 = vadd.xlane.f32.xlu0 %v1035
    %v1037 = vpop.xlane.xlu0 %1036
    %v1038 = vmul.f32 %v1034, %v42
    %v1039 = vmul.f32 %v1037, %v42
    %v1040 = vsub.f32 %v1030, %v1038
    %v1041 = vsub.f32 %v1031, %v1039
    %v1042 = vmul.f32 %v1040, %v1040
    %v1043 = vmul.f32 %v1041, %v1041
    %v1044 = vsel %vm29, %v1042, 0.0
    %1045 = vadd.xlane.f32.xlu0 %v1044
    %v1046 = vpop.xlane.xlu0 %1045
    %v1047 = vsel %vm29, %v1043, 0.0
    %1048 = vadd.xlane.f32.xlu0 %v1047
    %v1049 = vpop.xlane.xlu0 %1048
    %v1050 = vmul.f32 %v1046, %v42
    %v1051 = vmul.f32 %v1049, %v42
    %v1052 = vadd.f32 %v1050, 1e-12
    %v1053 = vadd.f32 %v1051, 1e-12
    %v1054 = vrsqrt.pop %v1052
    %v1055 = vmul.f32 %v1054, %v1052
    %v1056 = vmul.f32 %v1055, %v1054
    %v1057 = vmul.f32 0.5, %v1056
    %v1058 = vsub.f32 1.5, %v1057
    %v1059 = vmul.f32 %v1054, %v1058
    %vm1060 = vweird.f32 %v1052
    %vm1061 = vweird.f32 %v1054
    %vm1062 = vmor %vm1060, %vm1061
    %v1063 = vsel %vm1062, %v1054, %v1059
    %v1064 = vrsqrt.pop %v1053
    %v1065 = vmul.f32 %v1064, %v1053
    %v1066 = vmul.f32 %v1065, %v1064
    %v1067 = vmul.f32 0.5, %v1066
    %v1068 = vsub.f32 1.5, %v1067
    %v1069 = vmul.f32 %v1064, %v1068
    %vm1070 = vweird.f32 %v1053
    %vm1071 = vweird.f32 %v1064
    %vm1072 = vmor %vm1070, %vm1071
    %v1073 = vsel %vm1072, %v1064, %v1069
    %v1074 = vmul.f32 %v1040, %v1063
    %v1075 = vmul.f32 %v1041, %v1073
    %v1076 = vperm.slane %v25, 2
    %v1077 = vmul.f32 %v1074, %v1076
    %v1078 = vmul.f32 %v1075, %v1076
    %v1079 = vperm.slane %v25, 3
    %v1080 = vadd.f32 %v1077, %v1079
    %v1081 = vadd.f32 %v1078, %v1079
    %v1082 = vperm.slane %v25, 4
    %v1084 = vsel %vm29, %v1080, 0
    %v1087 = vsel %vm29, %v1081, 0
    %1089 = vmatpush.msra.mxu0 0.0
    %1090 = vmatpush.msra.mxu0 0.0
    %1091 = vmatpush.msra.mxu0 0.0
    %1092 = vmatpush.msra.mxu0 0.0
    %1093 = vmatpush.msra.mxu0 0.0
    %1094 = vmatpush.msra.mxu0 0.0
    %1095 = vmatpush.msra.mxu0 0.0
    %1096 = vmatpush.msra.mxu0 0.0
    %1097 = vmatpush.msra.mxu0 0.0
    %1098 = vmatpush.msra.mxu0 0.0
    %1099 = vmatpush.msra.mxu0 0.0
    %1100 = vmatpush.msra.mxu0 0.0
    %1101 = vmatpush.msra.mxu0 %v662
    %1102 = vmatpush.msra.mxu0 %v659
    %1103 = vmatpush.msra.mxu0 %v656
    %1104 = vmatpush.msra.mxu0 %v653
    %1105 = vmatmul.f32.gmra.mxu0 %v1084
    %v1106 = vpop.f32.mrf.mxu0
    %v1107 = vadd.f32 %v1082, %v1106
    %1108 = vmatmul.f32.gmra.mxu0 %v1087
    %v1109 = vpop.f32.mrf.mxu0
    %v1110 = vadd.f32 %v1082, %v1109
    %1111 = vdwg.mxu0
    %v1112 = vmul.f32 %v1107, 0.5
    %v1113 = vmul.f32 %v1110, 0.5
    %v1114 = vmul.f32 %v1107, 0.044715
    %v1115 = vmul.f32 %v1110, 0.044715
    %v1116 = vmul.f32 %v1114, %v1107
    %v1117 = vmul.f32 %v1115, %v1110
    %v1118 = vmul.f32 %v1116, %v1107
    %v1119 = vmul.f32 %v1117, %v1110
    %v1120 = vadd.f32 %v1107, %v1118
    %v1121 = vadd.f32 %v1110, %v1119
    %v1122 = vmul.f32 %v1120, 0.7978846
    %v1123 = vmul.f32 %v1121, 0.7978846
    %v1124 = vtanh.pop %v1122
    %v1125 = vtanh.pop %v1123
    %v1126 = vadd.f32 %v1124, 1.0
    %v1127 = vadd.f32 %v1125, 1.0
    %v1128 = vmul.f32 %v1112, %v1126
    %v1129 = vmul.f32 %v1113, %v1127
    %v1130 = vperm.slane %v25, 5
    %v1132 = vsel %vm569, %v1128, 0
    %v1135 = vsel %vm569, %v1129, 0
    %1137 = vmatpush.msra.mxu0 0.0
    %1138 = vmatpush.msra.mxu0 0.0
    %1139 = vmatpush.msra.mxu0 0.0
    %1140 = vmatpush.msra.mxu0 0.0
    %1141 = vmatpush.msra.mxu0 0.0
    %1142 = vmatpush.msra.mxu0 0.0
    %1143 = vmatpush.msra.mxu0 0.0
    %1144 = vmatpush.msra.mxu0 0.0
    %1145 = vmatpush.msra.mxu0 %v672
    %1146 = vmatpush.msra.mxu0 %v671
    %1147 = vmatpush.msra.mxu0 %v670
    %1148 = vmatpush.msra.mxu0 %v669
    %1149 = vmatpush.msra.mxu0 %v668
    %1150 = vmatpush.msra.mxu0 %v667
    %1151 = vmatpush.msra.mxu0 %v666
    %1152 = vmatpush.msra.mxu0 %v665
    %1153 = vmatmul.f32.gmra.mxu0 %v1132
    %v1154 = vpop.f32.mrf.mxu0
    %v1155 = vadd.f32 %v1130, %v1154
    %1156 = vmatmul.f32.gmra.mxu0 %v1135
    %v1157 = vpop.f32.mrf.mxu0
    %v1158 = vadd.f32 %v1130, %v1157
    %1159 = vdwg.mxu0
    %v1160 = vadd.f32 %v1080, %v1155
    %v1161 = vadd.f32 %v1081, %v1158
    %v1162 = vsel %vm29, %v1160, 0.0
    %1163 = vadd.xlane.f32.xlu0 %v1162
    %v1164 = vpop.xlane.xlu0 %1163
    %v1165 = vsel %vm29, %v1161, 0.0
    %1166 = vadd.xlane.f32.xlu0 %v1165
    %v1167 = vpop.xlane.xlu0 %1166
    %v1168 = vmul.f32 %v1164, %v42
    %v1169 = vmul.f32 %v1167, %v42
    %v1170 = vsub.f32 %v1160, %v1168
    %v1171 = vsub.f32 %v1161, %v1169
    %v1172 = vmul.f32 %v1170, %v1170
    %v1173 = vmul.f32 %v1171, %v1171
    %v1174 = vsel %vm29, %v1172, 0.0
    %1175 = vadd.xlane.f32.xlu0 %v1174
    %v1176 = vpop.xlane.xlu0 %1175
    %v1177 = vsel %vm29, %v1173, 0.0
    %1178 = vadd.xlane.f32.xlu0 %v1177
    %v1179 = vpop.xlane.xlu0 %1178
    %v1180 = vmul.f32 %v1176, %v42
    %v1181 = vmul.f32 %v1179, %v42
    %v1182 = vadd.f32 %v1180, 1e-12
    %v1183 = vadd.f32 %v1181, 1e-12
    %v1184 = vrsqrt.pop %v1182
    %v1185 = vmul.f32 %v1184, %v1182
    %v1186 = vmul.f32 %v1185, %v1184
    %v1187 = vmul.f32 0.5, %v1186
    %v1188 = vsub.f32 1.5, %v1187
    %v1189 = vmul.f32 %v1184, %v1188
    %vm1190 = vweird.f32 %v1182
    %vm1191 = vweird.f32 %v1184
    %vm1192 = vmor %vm1190, %vm1191
    %v1193 = vsel %vm1192, %v1184, %v1189
    %v1194 = vrsqrt.pop %v1183
    %v1195 = vmul.f32 %v1194, %v1183
    %v1196 = vmul.f32 %v1195, %v1194
    %v1197 = vmul.f32 0.5, %v1196
    %v1198 = vsub.f32 1.5, %v1197
    %v1199 = vmul.f32 %v1194, %v1198
    %vm1200 = vweird.f32 %v1183
    %vm1201 = vweird.f32 %v1194
    %vm1202 = vmor %vm1200, %vm1201
    %v1203 = vsel %vm1202, %v1194, %v1199
    %v1204 = vmul.f32 %v1170, %v1193
    %v1205 = vmul.f32 %v1171, %v1203
    %v1206 = vperm.slane %v25, 6
    %v1207 = vmul.f32 %v1204, %v1206
    %v1208 = vmul.f32 %v1205, %v1206
    %v1209 = vperm.slane %v25, 7
    %v1210 = vadd.f32 %v1207, %v1209
    %v1211 = vadd.f32 %v1208, %v1209
    %v1212 = vld [vmem:[%s5] sm:$0xff]
    %v1213 = vld [vmem:[%s5 + $0x8] sm:$0xff]
    %v1214 = vld [vmem:[%s5 + $0x10] sm:$0xff]
    %v1215 = vld [vmem:[%s5 + $0x18] sm:$0xff]
    %v1216 = vld [vmem:[%s5 + $0x20] sm:$0xff]
    %v1217 = vld [vmem:[%s5 + $0x28] sm:$0xff]
    %v1218 = vld [vmem:[%s5 + $0x30] sm:$0xff]
    %v1219 = vld [vmem:[%s5 + $0x38] sm:$0xff]
    %v1220 = vld [vmem:[%s5 + $0x40] sm:$0xff]
    %v1221 = vld [vmem:[%s5 + $0x48] sm:$0xff]
    %v1222 = vld [vmem:[%s5 + $0x50] sm:$0xff]
    %v1223 = vld [vmem:[%s5 + $0x58] sm:$0xff]
    %v1224 = vperm.slane %v26, 2
    %v1226 = vsel %vm29, %v1210, 0
    %v1229 = vsel %vm29, %v1211, 0
    %1231 = vmatpush.msra.mxu0 0.0
    %1232 = vmatpush.msra.mxu0 0.0
    %1233 = vmatpush.msra.mxu0 0.0
    %1234 = vmatpush.msra.mxu0 0.0
    %1235 = vmatpush.msra.mxu0 0.0
    %1236 = vmatpush.msra.mxu0 0.0
    %1237 = vmatpush.msra.mxu0 0.0
    %1238 = vmatpush.msra.mxu0 0.0
    %1239 = vmatpush.msra.mxu0 0.0
    %1240 = vmatpush.msra.mxu0 0.0
    %1241 = vmatpush.msra.mxu0 0.0
    %1242 = vmatpush.msra.mxu0 0.0
    %1243 = vmatpush.msra.mxu0 %v1215
    %1244 = vmatpush.msra.mxu0 %v1214
    %1245 = vmatpush.msra.mxu0 %v1213
    %1246 = vmatpush.msra.mxu0 %v1212
    %1247 = vmatmul.f32.gmra.mxu0 %v1226
    %v1248 = vpop.f32.mrf.mxu0
    %v1249 = vadd.f32 %v1224, %v1248
    %1250 = vmatmul.f32.gmra.mxu0 %v1229
    %v1251 = vpop.f32.mrf.mxu0
    %v1252 = vadd.f32 %v1224, %v1251
    %1253 = vdwg.mxu0
    %v1254 = vtanh.pop %v1249
    %v1255 = vtanh.pop %v1252
    %v1256 = vmax.f32 %v1254, 0.0
    %v1257 = vmax.f32 %v1255, 0.0
    %v1258 = vperm.slane %v26, 3
    %v1260 = vsel %vm29, %v1256, 0
    %v1263 = vsel %vm29, %v1257, 0
    %1265 = vmatpush.msra.mxu0 0.0
    %1266 = vmatpush.msra.mxu0 0.0
    %1267 = vmatpush.msra.mxu0 0.0
    %1268 = vmatpush.msra.mxu0 0.0
    %1269 = vmatpush.msra.mxu0 0.0
    %1270 = vmatpush.msra.mxu0 0.0
    %1271 = vmatpush.msra.mxu0 0.0
    %1272 = vmatpush.msra.mxu0 0.0
    %1273 = vmatpush.msra.mxu0 0.0
    %1274 = vmatpush.msra.mxu0 0.0
    %1275 = vmatpush.msra.mxu0 0.0
    %1276 = vmatpush.msra.mxu0 0.0
    %1277 = vmatpush.msra.mxu0 %v1219
    %1278 = vmatpush.msra.mxu0 %v1218
    %1279 = vmatpush.msra.mxu0 %v1217
    %1280 = vmatpush.msra.mxu0 %v1216
    %1281 = vmatmul.f32.gmra.mxu0 %v1260
    %v1282 = vpop.f32.mrf.mxu0
    %v1283 = vadd.f32 %v1258, %v1282
    %1284 = vmatmul.f32.gmra.mxu0 %v1263
    %v1285 = vpop.f32.mrf.mxu0
    %v1286 = vadd.f32 %v1258, %v1285
    %1287 = vdwg.mxu0
    %v1288 = vmax.f32 %v1283, 0.0
    %v1289 = vmax.f32 %v1286, 0.0
    %v1290 = vperm.slane %v26, 4
    %v1292 = vsel %vm29, %v1288, 0
    %v1295 = vsel %vm29, %v1289, 0
    %1297 = vmatpush.msra.mxu0 0.0
    %1298 = vmatpush.msra.mxu0 0.0
    %1299 = vmatpush.msra.mxu0 0.0
    %1300 = vmatpush.msra.mxu0 0.0
    %1301 = vmatpush.msra.mxu0 0.0
    %1302 = vmatpush.msra.mxu0 0.0
    %1303 = vmatpush.msra.mxu0 0.0
    %1304 = vmatpush.msra.mxu0 0.0
    %1305 = vmatpush.msra.mxu0 0.0
    %1306 = vmatpush.msra.mxu0 0.0
    %1307 = vmatpush.msra.mxu0 0.0
    %1308 = vmatpush.msra.mxu0 0.0
    %1309 = vmatpush.msra.mxu0 %v1223
    %1310 = vmatpush.msra.mxu0 %v1222
    %1311 = vmatpush.msra.mxu0 %v1221
    %1312 = vmatpush.msra.mxu0 %v1220
    %1313 = vmatmul.f32.gmra.mxu0 %v1292
    %v1314 = vpop.f32.mrf.mxu0
    %v1315 = vadd.f32 %v1290, %v1314
    %1316 = vmatmul.f32.gmra.mxu0 %v1295
    %v1317 = vpop.f32.mrf.mxu0
    %v1318 = vadd.f32 %v1290, %v1317
    %1319 = vdwg.mxu0
    %v1322 = vrot.slane %v1318, 7
    %vm1323 = vcmask 1041409
    %v1324 = vsel %vm1323, %v1322, %v1315
    %vm1326 = vcmask 25600
    %1327 = vst.msk [vmem:[#allocation2] sm:$0x3] %vm1326, %v1324
    // Predicated region
    $region26: #{wrime_bert_forward.1} parent=1 // pred_check
      _
    $region27: #{wrime_bert_forward.1} parent=1 // pred_check_branch
      %1329 = sbr.rel (0) target = $region29
    $region28: #{wrime_bert_forward.1} parent=1 // pred_region
      %1331 = vsyncadd [#allocation3], 0
      %s1333 = sshll.u32 [#allocation2], 4
      %s1334 = int_to_ptr.vmem [resolvable:$true] %s1333
      %s1335 = sshll.u32 %s6, 4
      %s1336 = int_to_ptr.hbm [resolvable:$true] %s1335
      %1338 = dma.vmem_to_hbm [thread:$0]  %s1334, 32, %s1336, [#allocation3]
    $region29: #{wrime_bert_forward.1} parent=1 // pred_fallthru
      _
    // Predicated region
    $region30: #{wrime_bert_forward.1} parent=1 // pred_check
      _
    $region31: #{wrime_bert_forward.1} parent=1 // pred_check_branch
      %1340 = sbr.rel (0) target = $region33
    $region32: #{wrime_bert_forward.1} parent=1 // pred_region
      %1342 = dma.done [#allocation3], 32
    $region33: #{wrime_bert_forward.1} parent=1 // pred_fallthru
      _
    %1343 = vsyncpa [#allocation3], 1

</llo_original>
